<compile_context>
chip_gen: v6e
topology: v6e:2x2x1
jax: 0.10.0
libtpu: 0.0.40
codegen_flags: <defaults>
</compile_context>

<pallas_src>
import functools

import jax
import jax.numpy as jnp
from jax.experimental import pallas as pl
from jax.experimental.pallas import tpu as pltpu


def _attn_kernel(x_ref, kt_ref, w1t_ref, b1_ref, o_ref):
    TB, S, F = x_ref.shape
    H, L = kt_ref.shape

    x3 = x_ref[...]                                    # (TB, S, F)

    # ---- first linear + tanh on the flattened token slab -------------------
    # Leading-dim flatten only (minor (S, F) tiles untouched) -> layout-free.
    x2 = x3.reshape(TB * S, F)                         # (TB*S, F)
    a2 = jnp.tanh(
        jnp.dot(x2, w1t_ref[...], preferred_element_type=jnp.float32)
        + b1_ref[...]
    )                                                  # (TB*S, H)

    # ---- attention logits: one flat MXU matmul ------------------------------
    # K^T is batch-invariant; keep everything 2-D until the softmax.
    s2 = jnp.dot(a2, kt_ref[...], preferred_element_type=jnp.float32)  # (TB*S, L)
    s3 = s2.reshape(TB, S, L)                          # (TB, S, L)

    # ---- softmax over the sequence axis (axis=1, sublane reduce) ------------
    m = jnp.max(s3, axis=1, keepdims=True)             # (TB, 1, L)
    e = jnp.exp(s3 - m)                                # (TB, S, L)
    denom = jnp.sum(e, axis=1, keepdims=True)          # (TB, 1, L)
    p = e * pl.reciprocal(denom, approx=False)         # (TB, S, L)

    # ---- P^T @ x : lhs-transposed batched matmul, no explicit transpose -----
    out = jnp.einsum(
        "bsl,bsf->blf", p, x3, preferred_element_type=jnp.float32
    )                                                  # (TB, L, F)
    o_ref[...] = out.astype(o_ref.dtype)


def _pick_batch_block(B, batch_block):
    """Largest divisor of B that is <= batch_block, preferring >= 2 grid steps
    (so the 'parallel' batch-block axis can shard across v7x's 2 TCs)."""
    cap = max(1, min(batch_block, B))
    divs = [d for d in range(1, cap + 1) if B % d == 0]
    multi = [d for d in divs if B // d >= 2]
    return max(multi) if multi else max(divs)


@functools.partial(jax.jit, static_argnames=("batch_block",))
def nc_label_specific_self_attention(x, label, w1, b1, w2, b2, *, batch_block=16):
    B, S, F = x.shape
    L, F2 = label.shape
    H = w1.shape[0]
    assert w1.shape == (H, F)
    assert w2.shape == (H, F2)
    assert b1.shape == (H,)
    assert b2.shape == (H,)

    # Batch-invariant label projection hoisted out of the kernel, and
    # pre-transposed so the in-kernel score matmul is (TB*S, H) @ (H, L).
    kt = (jnp.dot(label, w2.T) + b2).T.astype(jnp.float32)       # (H, L)
    # Pre-transpose W1 so the first linear needs no in-kernel transpose.
    w1t = jnp.asarray(w1.T, dtype=jnp.float32)                   # (F, H)
    b1_2d = b1.reshape(1, H).astype(jnp.float32)                 # (1, H)

    # TB divides B by construction -> no pad / slice HBM round trips.
    TB = _pick_batch_block(B, batch_block)
    n_blocks = B // TB

    # VMEM budget derived from the block footprint (f32 bytes):
    #   double-buffered x and out tiles + weights + live intermediates,
    # with generous headroom, clamped to stay inside v7x's 64 MiB physical VMEM.
    block_bytes = 4 * (
        2 * TB * S * F          # x tile, double-buffered
        + 2 * TB * L * F        # out tile, double-buffered
        + F * H + H * L + H     # W1^T, K^T, b1
        + TB * S * H            # tanh activations
        + 2 * TB * S * L        # scores / probs
        + TB * L * F            # out accumulator
    )
    vmem_limit = int(min(48 * 1024 * 1024, max(16 * 1024 * 1024, 8 * block_bytes)))

    out = pl.pallas_call(
        _attn_kernel,
        out_shape=jax.ShapeDtypeStruct((B, L, F), x.dtype),
        grid_spec=pltpu.PrefetchScalarGridSpec(
            num_scalar_prefetch=0,
            grid=(n_blocks,),
            in_specs=[
                pl.BlockSpec((TB, S, F), lambda b: (b, 0, 0)),   # x batch block
                pl.BlockSpec((H, L), lambda b: (0, 0)),          # K^T (hoisted)
                pl.BlockSpec((F, H), lambda b: (0, 0)),          # W1^T
                pl.BlockSpec((1, H), lambda b: (0, 0)),          # b1
            ],
            out_specs=pl.BlockSpec((TB, L, F), lambda b: (b, 0, 0)),
        ),
        compiler_params=pltpu.CompilerParams(
            dimension_semantics=("parallel",),
            vmem_limit_bytes=vmem_limit,
        ),
    )(x.astype(jnp.float32), kt, w1t, b1_2d)

    return out


def _reference(x, label, w1, b1, w2, b2):
    a = jnp.tanh(jnp.einsum("bsf,hf->bsh", x, w1) + b1)
    k = jnp.einsum("lf,hf->lh", label, w2) + b2
    scores = jnp.einsum("bsh,lh->bsl", a, k)
    p = jax.nn.softmax(scores, axis=1)
    return jnp.einsum("bls,bsf->blf", jnp.swapaxes(p, 1, 2), x)


if __name__ == "__main__":
    # Small shapes consistent with the module.  B=32, S=8 gives TB=16 with the
    # default batch_block -> the first linear sees TB*S = 128 rows and the grid
    # has 2 parallel steps (shardable across v7x's two TensorCores).
    B, S = 32, 8          # batch, sequence length
    F = 32                # in_features  (x feature dim)
    F2 = 16               # in_features2 (label feature dim)
    H = 32                # hidden_features
    L = 8                 # number of labels

    key = jax.random.PRNGKey(0)
    kx, kl, kw1, kb1, kw2, kb2 = jax.random.split(key, 6)

    x = jax.random.normal(kx, (B, S, F), dtype=jnp.float32)
    label = jax.random.normal(kl, (L, F2), dtype=jnp.float32)
    # PyTorch nn.Linear layout: weight (out_features, in_features).
    w1 = 0.1 * jax.random.normal(kw1, (H, F), dtype=jnp.float32)
    b1 = 0.1 * jax.random.normal(kb1, (H,), dtype=jnp.float32)
    w2 = 0.1 * jax.random.normal(kw2, (H, F2), dtype=jnp.float32)
    b2 = 0.1 * jax.random.normal(kb2, (H,), dtype=jnp.float32)

    out = nc_label_specific_self_attention(x, label, w1, b1, w2, b2, batch_block=16)
    out = jax.block_until_ready(out)

    ref = _reference(x, label, w1, b1, w2, b2)
    assert out.shape == (B, L, F), out.shape
    assert jnp.allclose(out, ref, atol=1e-4, rtol=1e-4), float(
        jnp.max(jnp.abs(out - ref))
    )

    print("KERNEL_OK")
</pallas_src>

<mosaic_0001>
module attributes {stable_mosaic.version = 11 : i64} {
  func.func @_attn_kernel(%arg0: i32, %arg1: memref<16x8x32xf32, #tpu.memory_space<vmem>>, %arg2: memref<32x8xf32, #tpu.memory_space<vmem>>, %arg3: memref<32x32xf32, #tpu.memory_space<vmem>>, %arg4: memref<1x32xf32, #tpu.memory_space<vmem>>, %arg5: memref<16x8x32xf32, #tpu.memory_space<vmem>>) attributes {dimension_semantics = [#tpu.dimension_semantics<parallel>], iteration_bounds = array<i64: 2>, scalar_prefetch = 0 : i64, scratch_operands = 0 : i64, tpu.core_type = #tpu.core_type<tc>, window_params = [{transform_indices = @transform_0, window_bounds = array<i64: 16, 8, 32>}, {pipeline_mode = #tpu.pipeline_mode<synchronous>, transform_indices = @transform_1, window_bounds = array<i64: 32, 8>}, {pipeline_mode = #tpu.pipeline_mode<synchronous>, transform_indices = @transform_2, window_bounds = array<i64: 32, 32>}, {pipeline_mode = #tpu.pipeline_mode<synchronous>, transform_indices = @transform_3, window_bounds = array<i64: 1, 32>}, {transform_indices = @transform_4, window_bounds = array<i64: 16, 8, 32>}]} {
    %c0 = arith.constant 0 : index
    %c0_0 = arith.constant 0 : index
    %c0_1 = arith.constant 0 : index
    %0 = vector.load %arg1[%c0, %c0_0, %c0_1] : memref<16x8x32xf32, #tpu.memory_space<vmem>>, vector<16x8x32xf32>
    %1 = vector.shape_cast %0 : vector<16x8x32xf32> to vector<128x32xf32>
    %c0_2 = arith.constant 0 : index
    %c0_3 = arith.constant 0 : index
    %2 = vector.load %arg3[%c0_2, %c0_3] : memref<32x32xf32, #tpu.memory_space<vmem>>, vector<32x32xf32>
    %cst = arith.constant dense<0.000000e+00> : vector<128x32xf32>
    %3 = tpu.matmul %1, %2, %cst {dimension_numbers = #tpu.dot_dimension_numbers<[1], [0], [0], [1], [0, 0, 1, 1], [], []>} : vector<128x32xf32>, vector<32x32xf32>, vector<128x32xf32> -> vector<128x32xf32>
    %c0_4 = arith.constant 0 : index
    %c0_5 = arith.constant 0 : index
    %4 = vector.load %arg4[%c0_4, %c0_5] : memref<1x32xf32, #tpu.memory_space<vmem>>, vector<1x32xf32>
    %5 = vector.broadcast %4 : vector<1x32xf32> to vector<128x32xf32>
    %6 = arith.addf %3, %5 : vector<128x32xf32>
    %7 = math.tanh %6 : vector<128x32xf32>
    %c0_6 = arith.constant 0 : index
    %c0_7 = arith.constant 0 : index
    %8 = vector.load %arg2[%c0_6, %c0_7] : memref<32x8xf32, #tpu.memory_space<vmem>>, vector<32x8xf32>
    %cst_8 = arith.constant dense<0.000000e+00> : vector<128x8xf32>
    %9 = tpu.matmul %7, %8, %cst_8 {dimension_numbers = #tpu.dot_dimension_numbers<[1], [0], [0], [1], [0, 0, 1, 1], [], []>} : vector<128x32xf32>, vector<32x8xf32>, vector<128x8xf32> -> vector<128x8xf32>
    %10 = vector.shape_cast %9 : vector<128x8xf32> to vector<16x8x8xf32>
    %cst_9 = arith.constant dense<0xFF800000> : vector<16x8xf32>
    %11 = vector.multi_reduction <maximumf>, %10, %cst_9 [1] : vector<16x8x8xf32> to vector<16x8xf32>
    %12 = vector.shape_cast %11 : vector<16x8xf32> to vector<16x1x8xf32>
    %13 = vector.broadcast %12 : vector<16x1x8xf32> to vector<16x8x8xf32>
    %14 = arith.subf %10, %13 : vector<16x8x8xf32>
    %15 = math.exp %14 : vector<16x8x8xf32>
    %cst_10 = arith.constant dense<0.000000e+00> : vector<16x8xf32>
    %16 = vector.multi_reduction <add>, %15, %cst_10 [1] : vector<16x8x8xf32> to vector<16x8xf32>
    %17 = vector.shape_cast %16 : vector<16x8xf32> to vector<16x1x8xf32>
    %18 = tpu.reciprocal %17 : vector<16x1x8xf32> -> vector<16x1x8xf32>
    %19 = vector.broadcast %18 : vector<16x1x8xf32> to vector<16x8x8xf32>
    %20 = arith.mulf %15, %19 : vector<16x8x8xf32>
    "tpu.trace_start"() <{level = 10 : i32, message = "bsl,bsf->blf"}> : () -> ()
    %cst_11 = arith.constant dense<0.000000e+00> : vector<16x8x32xf32>
    %21 = tpu.matmul %20, %0, %cst_11 {dimension_numbers = #tpu.dot_dimension_numbers<[1], [1], [2], [2], [0, 0, 0, 2, 1, 2], [0], [0]>} : vector<16x8x8xf32>, vector<16x8x32xf32>, vector<16x8x32xf32> -> vector<16x8x32xf32>
    "tpu.trace_stop"() : () -> ()
    %c0_12 = arith.constant 0 : index
    %c0_13 = arith.constant 0 : index
    %c0_14 = arith.constant 0 : index
    %22 = vector.load %arg5[%c0_12, %c0_13, %c0_14] : memref<16x8x32xf32, #tpu.memory_space<vmem>>, vector<16x8x32xf32>
    tpu.vector_store %arg5[%c0_12, %c0_13, %c0_14], %21 {strides = array<i32>} : memref<16x8x32xf32, #tpu.memory_space<vmem>>, vector<16x8x32xf32>,
    return
  }
  func.func @transform_0(%arg0: i32) -> (i32, i32, i32) {
    %c0_i32 = arith.constant 0 : i32
    %c0_i32_0 = arith.constant 0 : i32
    %c0_i32_1 = arith.constant 0 : i32
    return %arg0, %c0_i32, %c0_i32_0 : i32, i32, i32
  }
  func.func @transform_1(%arg0: i32) -> (i32, i32) {
    %c0_i32 = arith.constant 0 : i32
    %c0_i32_0 = arith.constant 0 : i32
    %c0_i32_1 = arith.constant 0 : i32
    return %c0_i32, %c0_i32_0 : i32, i32
  }
  func.func @transform_2(%arg0: i32) -> (i32, i32) {
    %c0_i32 = arith.constant 0 : i32
    %c0_i32_0 = arith.constant 0 : i32
    %c0_i32_1 = arith.constant 0 : i32
    return %c0_i32, %c0_i32_0 : i32, i32
  }
  func.func @transform_3(%arg0: i32) -> (i32, i32) {
    %c0_i32 = arith.constant 0 : i32
    %c0_i32_0 = arith.constant 0 : i32
    %c0_i32_1 = arith.constant 0 : i32
    return %c0_i32, %c0_i32_0 : i32, i32
  }
  func.func @transform_4(%arg0: i32) -> (i32, i32, i32) {
    %c0_i32 = arith.constant 0 : i32
    %c0_i32_0 = arith.constant 0 : i32
    %c0_i32_1 = arith.constant 0 : i32
    return %arg0, %c0_i32, %c0_i32_0 : i32, i32, i32
  }
}

</mosaic_0001>

<llo_original>
// kernel: nc_label_specific_self_attention.1
$region0: #{nc_label_specific_self_attention.1}
  #allocation0 [shape = 'u32[]', space=smem, size = 0x4, offset = 0x4, fixed_abs, tag = 'smem constant byte address 0x4 - core index']
  #allocation1 [shape = 'u32[144,128]{1,0:T(1,128)}', space=vmem, size = 0x12000, scoped, tag = 'internal scratch']
  %s0 = inlined_call_operand.hbm [shape: f32[32,8,32], index: 0, kind: input, shape index: {}]
  %s1 = inlined_call_operand.vmem [shape: f32[32,8], index: 1, kind: input, shape index: {}]
  %s2 = inlined_call_operand.vmem [shape: f32[32,32], index: 2, kind: input, shape index: {}]
  %s3 = inlined_call_operand.vmem [shape: f32[1,32], index: 3, kind: input, shape index: {}]
  %s4 = inlined_call_operand.hbm [shape: f32[32,8,32], index: 4, kind: output, shape index: {}]
  %s5 = sld [smem:[#allocation0]]
  $region53: #{nc_label_specific_self_attention.1} parent=0
    _
  %s7 = ssub.s32 1, %s5
  %s8 = scalar_select 0, %s7, %s5
  $region1: #{nc_label_specific_self_attention.1} parent=0
    #allocation2 [shape = 'u8[131072]{0}', space=vmem, size = 0x20000, scoped, tag = 'input window, operand 0']
    #allocation3 [shape = 's32[2]{0}', space=sflag, size = 0x8, scoped, tag = 'scoped memory for nc_label_specific_self_attention.1']
    #allocation4 [shape = 's32[2]{0}', space=sflag, size = 0x8, scoped, tag = 'scoped memory for nc_label_specific_self_attention.1']
    #allocation5 [shape = 'u8[131072]{0}', space=vmem, size = 0x20000, scoped, tag = 'output window, operand 0']
    %9 = vsyncpa [#allocation3], 0
    %s10 = scalar_lea.sflag [#allocation3], 1
    %11 = vsyncpa %s10, 0
    %12 = vsyncpa [#allocation4], 0
    %s13 = scalar_lea.sflag [#allocation4], 1
    %14 = vsyncpa %s13, 0
    loop: start=0, step=1, limit=4
    $region2: #{nc_label_specific_self_attention.1} parent=1 // loop_pre_header
      _
    $region3: #{nc_label_specific_self_attention.1} parent=1 // loop_header
      %s16 = sphi 0, %s20
      %p17 = scmp.ge.s32.totalorder %s16, 4
      %s26 = sphi 0, %s28
      %s29 = sphi 0, %s26
      %s30 = sphi 0, %s29
      %s46 = sphi 0, %s30
      %s50 = sphi 0, %s50
      %s52 = sphi 0, %s50
      %s53 = sphi 0, %s52
      %s67 = sphi 0, %s53
      %s71 = sphi 0, %s71
      %s73 = sphi 0, %s71
      %s74 = sphi 0, %s73
      %s88 = sphi 0, %s74
      %s92 = sphi 0, %s92
      %s94 = sphi 0, %s92
      %s95 = sphi 0, %s94
      %s109 = sphi 0, %s95
      %s115 = sphi 0, %s117
      %s118 = sphi 0, %s115
      %s119 = sphi 0, %s118
      %s135 = sphi 0, %s119
    $region4: #{nc_label_specific_self_attention.1} parent=1 // loop_header_branch
      %19 = sbr.rel (%p17) target = $region8
    $region5: #{nc_label_specific_self_attention.1} parent=1 // loop_body
      %s21 = ssub.s32 %s16, 1
      %s22 = ssub.s32 %s16, 2
      %s23 = sadd.s32 %s16, 1
      %s24 = ssub.s32 %s16, %s23
      %p25 = scmp.eq.s32.totalorder %s24, 0
      %s27 = sadd.s32 %s26, 1
      %s28 = scalar_select %p25, %s26, %s27
      %p31 = pneg %p25
      %p32 = scmp.eq.s32.totalorder %s16, 1
      %p33 = por %p31, %p32
      %p34 = scmp.ne.s32.totalorder %s26, %s29
      %p35 = scmp.eq.s32.totalorder %s16, 0
      %p36 = por %p34, %p35
      %p37 = scmp.ne.s32.totalorder %s26, %s29
      %p38 = scmp.eq.s32.totalorder %s21, 1
      %p39 = por %p37, %p38
      %p40 = scmp.ne.s32.totalorder %s29, %s30
      %p41 = scmp.eq.s32.totalorder %s21, 0
      %p42 = por %p40, %p41
      %p43 = scmp.ne.s32.totalorder %s29, %s30
      %p44 = scmp.eq.s32.totalorder %s22, 1
      %p45 = por %p43, %p44
      %p47 = scmp.ne.s32.totalorder %s30, %s46
      %p48 = scmp.eq.s32.totalorder %s22, 0
      %p49 = por %p47, %p48
      %s51 = sadd.s32 %s50, 1
      %p54 = scmp.eq.s32.totalorder %s16, 1
      %p55 = scmp.ne.s32.totalorder %s50, %s52
      %p56 = scmp.eq.s32.totalorder %s16, 0
      %p57 = por %p55, %p56
      %p58 = scmp.ne.s32.totalorder %s50, %s52
      %p59 = scmp.eq.s32.totalorder %s21, 1
      %p60 = por %p58, %p59
      %p61 = scmp.ne.s32.totalorder %s52, %s53
      %p62 = scmp.eq.s32.totalorder %s21, 0
      %p63 = por %p61, %p62
      %p64 = scmp.ne.s32.totalorder %s52, %s53
      %p65 = scmp.eq.s32.totalorder %s22, 1
      %p66 = por %p64, %p65
      %p68 = scmp.ne.s32.totalorder %s53, %s67
      %p69 = scmp.eq.s32.totalorder %s22, 0
      %p70 = por %p68, %p69
      %s72 = sadd.s32 %s71, 1
      %p75 = scmp.eq.s32.totalorder %s16, 1
      %p76 = scmp.ne.s32.totalorder %s71, %s73
      %p77 = scmp.eq.s32.totalorder %s16, 0
      %p78 = por %p76, %p77
      %p79 = scmp.ne.s32.totalorder %s71, %s73
      %p80 = scmp.eq.s32.totalorder %s21, 1
      %p81 = por %p79, %p80
      %p82 = scmp.ne.s32.totalorder %s73, %s74
      %p83 = scmp.eq.s32.totalorder %s21, 0
      %p84 = por %p82, %p83
      %p85 = scmp.ne.s32.totalorder %s73, %s74
      %p86 = scmp.eq.s32.totalorder %s22, 1
      %p87 = por %p85, %p86
      %p89 = scmp.ne.s32.totalorder %s74, %s88
      %p90 = scmp.eq.s32.totalorder %s22, 0
      %p91 = por %p89, %p90
      %s93 = sadd.s32 %s92, 1
      %p96 = scmp.eq.s32.totalorder %s16, 1
      %p97 = scmp.ne.s32.totalorder %s92, %s94
      %p98 = scmp.eq.s32.totalorder %s16, 0
      %p99 = por %p97, %p98
      %p100 = scmp.ne.s32.totalorder %s92, %s94
      %p101 = scmp.eq.s32.totalorder %s21, 1
      %p102 = por %p100, %p101
      %p103 = scmp.ne.s32.totalorder %s94, %s95
      %p104 = scmp.eq.s32.totalorder %s21, 0
      %p105 = por %p103, %p104
      %p106 = scmp.ne.s32.totalorder %s94, %s95
      %p107 = scmp.eq.s32.totalorder %s22, 1
      %p108 = por %p106, %p107
      %p110 = scmp.ne.s32.totalorder %s95, %s109
      %p111 = scmp.eq.s32.totalorder %s22, 0
      %p112 = por %p110, %p111
      %s113 = ssub.s32 %s16, %s23
      %p114 = scmp.eq.s32.totalorder %s113, 0
      %s116 = sadd.s32 %s115, 1
      %s117 = scalar_select %p114, %s115, %s116
      %p120 = pneg %p114
      %p121 = scmp.eq.s32.totalorder %s16, 1
      %p122 = por %p120, %p121
      %p123 = scmp.ne.s32.totalorder %s115, %s118
      %p124 = scmp.eq.s32.totalorder %s16, 0
      %p125 = por %p123, %p124
      %p126 = scmp.ne.s32.totalorder %s115, %s118
      %p127 = scmp.eq.s32.totalorder %s21, 1
      %p128 = por %p126, %p127
      %p129 = scmp.ne.s32.totalorder %s118, %s119
      %p130 = scmp.eq.s32.totalorder %s21, 0
      %p131 = por %p129, %p130
      %p132 = scmp.ne.s32.totalorder %s118, %s119
      %p133 = scmp.eq.s32.totalorder %s22, 1
      %p134 = por %p132, %p133
      %p136 = scmp.ne.s32.totalorder %s119, %s135
      %p137 = scmp.eq.s32.totalorder %s22, 0
      %p138 = por %p136, %p137
      %p139 = scmp.le.s32.totalorder 1, %s16
      %p140 = scmp.lt.s32.totalorder %s16, 3
      %p141 = pnand %p139, %p140
      %p142 = pneg %p141
      // Predicated region
      $region9: #{nc_label_specific_self_attention.1} parent=5 // pred_check
        _
      $region10: #{nc_label_specific_self_attention.1} parent=5 // pred_check_branch
        %144 = sbr.rel (%p141) target = $region12
      $region11: #{nc_label_specific_self_attention.1} parent=5 // pred_region
        %s145 = ssub.s32 %s16, 1
        // Predicated region
        $region13: #{nc_label_specific_self_attention.1} parent=11 // pred_check
          %p146 = pneg %p63
        $region14: #{nc_label_specific_self_attention.1} parent=11 // pred_check_branch
          %148 = sbr.rel (%p146) target = $region16
        $region15: #{nc_label_specific_self_attention.1} parent=11 // pred_region
          _
        $region16: #{nc_label_specific_self_attention.1} parent=11 // pred_fallthru
          _
        // Predicated region
        $region17: #{nc_label_specific_self_attention.1} parent=11 // pred_check
          %p149 = pneg %p84
        $region18: #{nc_label_specific_self_attention.1} parent=11 // pred_check_branch
          %151 = sbr.rel (%p149) target = $region20
        $region19: #{nc_label_specific_self_attention.1} parent=11 // pred_region
          _
        $region20: #{nc_label_specific_self_attention.1} parent=11 // pred_fallthru
          _
        // Predicated region
        $region21: #{nc_label_specific_self_attention.1} parent=11 // pred_check
          %p152 = pneg %p105
        $region22: #{nc_label_specific_self_attention.1} parent=11 // pred_check_branch
          %154 = sbr.rel (%p152) target = $region24
        $region23: #{nc_label_specific_self_attention.1} parent=11 // pred_region
          _
        $region24: #{nc_label_specific_self_attention.1} parent=11 // pred_fallthru
          _
      $region12: #{nc_label_specific_self_attention.1} parent=5 // pred_fallthru
        _
      %p155 = scmp.lt.s32.totalorder %s16, 2
      // Predicated region
      $region25: #{nc_label_specific_self_attention.1} parent=5 // pred_check
        %p156 = pneg %p155
      $region26: #{nc_label_specific_self_attention.1} parent=5 // pred_check_branch
        %158 = sbr.rel (%p156) target = $region28
      $region27: #{nc_label_specific_self_attention.1} parent=5 // pred_region
        // Predicated region
        $region29: #{nc_label_specific_self_attention.1} parent=27 // pred_check
          %p159 = pneg %p36
        $region30: #{nc_label_specific_self_attention.1} parent=27 // pred_check_branch
          %161 = sbr.rel (%p159) target = $region32
        $region31: #{nc_label_specific_self_attention.1} parent=27 // pred_region
          %s162 = sand.u32 %s26, 1
          %s163 = scalar_lea.sflag [#allocation3], %s162
          %s164 = sand.u32 %s26, 1
          %s165 = smul.addr %s164, 128
          %s166 = scalar_lea.vmem [#allocation2], %s165
          %s167 = smul.u32 16, %s16
          %s169 = ssub.s32 2048, 2048
          %170 = vsyncadd %s163, %s169
          %s171 = smul.addr %s167, 128
          %s172 = scalar_lea.hbm %s0, %s171
          %s173 = sshll.u32 %s166, 4
          %s174 = int_to_ptr.vmem [resolvable:$true] %s173
          %179 = dma.hbm_to_vmem [thread:$0]  %s172, 2048, %s174, %s163, 128, 128, 8
        $region32: #{nc_label_specific_self_attention.1} parent=27 // pred_fallthru
          _
      $region28: #{nc_label_specific_self_attention.1} parent=5 // pred_fallthru
        _
      %p180 = scmp.le.s32.totalorder 1, %s16
      %p181 = scmp.lt.s32.totalorder %s16, 3
      %p182 = pnand %p180, %p181
      %p183 = pneg %p182
      // Predicated region
      $region33: #{nc_label_specific_self_attention.1} parent=5 // pred_check
        _
      $region34: #{nc_label_specific_self_attention.1} parent=5 // pred_check_branch
        %185 = sbr.rel (%p182) target = $region36
      $region35: #{nc_label_specific_self_attention.1} parent=5 // pred_region
        %s186 = ssub.s32 %s16, 1
        %s187 = sand.u32 %s29, 1
        %s188 = scalar_lea.sflag [#allocation3], %s187
        %s189 = sand.u32 %s29, 1
        %s190 = smul.addr %s189, 128
        %s191 = scalar_lea.vmem [#allocation2], %s190
        // Predicated region
        $region37: #{nc_label_specific_self_attention.1} parent=35 // pred_check
          %p192 = pneg %p42
        $region38: #{nc_label_specific_self_attention.1} parent=35 // pred_check_branch
          %194 = sbr.rel (%p192) target = $region40
        $region39: #{nc_label_specific_self_attention.1} parent=35 // pred_region
          %195 = dma.done %s188, 2048
        $region40: #{nc_label_specific_self_attention.1} parent=35 // pred_fallthru
          _
        %s196 = sand.u32 %s29, 1
        %s197 = scalar_lea.sflag [#allocation3], %s196
        %s198 = sand.u32 %s29, 1
        %s199 = smul.addr %s198, 128
        %s200 = scalar_lea.vmem [#allocation2], %s199
        %p201 = pneg %p42
        %p202 = pneg %p39
        %p203 = pneg %p63
        %p204 = pneg %p60
        %p205 = pneg %p84
        %p206 = pneg %p81
        %p207 = pneg %p105
        %p208 = pneg %p102
        %p209 = pneg %p131
        %p210 = pneg %p128
        %s211 = sand.u32 %s118, 1
        %s212 = scalar_lea.sflag [#allocation4], %s211
        %s213 = sand.u32 %s118, 1
        %s214 = smul.addr %s213, 128
        %s215 = scalar_lea.vmem [#allocation5], %s214
        %s216 = smul.u32 16, %s21
        %s217 = smul.u32 16, %s21
        %v218 = vld [vmem:[%s191] sm:$0xff]
        %v219 = vld [vmem:[%s191 + $0x8] sm:$0xff]
        %v220 = vld [vmem:[%s191 + $0x10] sm:$0xff]
        %v221 = vld [vmem:[%s191 + $0x18] sm:$0xff]
        %v222 = vld [vmem:[%s191 + $0x20] sm:$0xff]
        %v223 = vld [vmem:[%s191 + $0x28] sm:$0xff]
        %v224 = vld [vmem:[%s191 + $0x30] sm:$0xff]
        %v225 = vld [vmem:[%s191 + $0x38] sm:$0xff]
        %v226 = vld [vmem:[%s191 + $0x40] sm:$0xff]
        %v227 = vld [vmem:[%s191 + $0x48] sm:$0xff]
        %v228 = vld [vmem:[%s191 + $0x50] sm:$0xff]
        %v229 = vld [vmem:[%s191 + $0x58] sm:$0xff]
        %v230 = vld [vmem:[%s191 + $0x60] sm:$0xff]
        %v231 = vld [vmem:[%s191 + $0x68] sm:$0xff]
        %v232 = vld [vmem:[%s191 + $0x70] sm:$0xff]
        %v233 = vld [vmem:[%s191 + $0x78] sm:$0xff]
        %v234 = vld [vmem:[%s2] sm:$0xff]
        %v235 = vld [vmem:[%s2 + $0x8] sm:$0xff]
        %v236 = vld [vmem:[%s2 + $0x10] sm:$0xff]
        %v237 = vld [vmem:[%s2 + $0x18] sm:$0xff]
        %v238 = vld [vmem:[%s3] sm:$0x1]
        %v240 = vlaneseq
        %v241 = vshrl.u32 %v240, 7
        %v242 = vsub.s32 0, %v241
        %v243 = vrot.slane %v238, %v242
        %vm245 = vcmask 261120
        %v247 = vsel %vm245, %v218, 0
        %v250 = vsel %vm245, %v219, 0
        %v253 = vsel %vm245, %v220, 0
        %v256 = vsel %vm245, %v221, 0
        %v259 = vsel %vm245, %v222, 0
        %v262 = vsel %vm245, %v223, 0
        %v265 = vsel %vm245, %v224, 0
        %v268 = vsel %vm245, %v225, 0
        %v271 = vsel %vm245, %v226, 0
        %v274 = vsel %vm245, %v227, 0
        %v277 = vsel %vm245, %v228, 0
        %v280 = vsel %vm245, %v229, 0
        %v283 = vsel %vm245, %v230, 0
        %v286 = vsel %vm245, %v231, 0
        %v289 = vsel %vm245, %v232, 0
        %v292 = vsel %vm245, %v233, 0
        %294 = vmatprep.subr.mxu0 0.0
        %295 = vmatpush1.msra.mxu0 0.0
        %296 = vmatprep.subr.mxu0 0.0
        %297 = vmatpush1.msra.mxu0 0.0
        %298 = vmatprep.subr.mxu0 0.0
        %299 = vmatpush1.msra.mxu0 0.0
        %300 = vmatprep.subr.mxu0 0.0
        %301 = vmatpush1.msra.mxu0 0.0
        %302 = vmatprep.subr.mxu0 0.0
        %303 = vmatpush1.msra.mxu0 0.0
        %304 = vmatprep.subr.mxu0 0.0
        %305 = vmatpush1.msra.mxu0 0.0
        %306 = vmatprep.subr.mxu0 0.0
        %307 = vmatpush1.msra.mxu0 0.0
        %308 = vmatprep.subr.mxu0 0.0
        %309 = vmatpush1.msra.mxu0 0.0
        %310 = vmatprep.subr.mxu0 0.0
        %311 = vmatpush1.msra.mxu0 0.0
        %312 = vmatprep.subr.mxu0 0.0
        %313 = vmatpush1.msra.mxu0 0.0
        %314 = vmatprep.subr.mxu0 0.0
        %315 = vmatpush1.msra.mxu0 0.0
        %316 = vmatprep.subr.mxu0 0.0
        %317 = vmatpush1.msra.mxu0 0.0
        %318 = vmatprep.subr.mxu0 0.0
        %319 = vmatpush1.msra.mxu0 %v237
        %320 = vmatprep.subr.mxu0 0.0
        %321 = vmatpush1.msra.mxu0 %v236
        %322 = vmatprep.subr.mxu0 0.0
        %323 = vmatpush1.msra.mxu0 %v235
        %324 = vmatprep.subr.mxu0 0.0
        %325 = vmatpush1.msra.mxu0 %v234
        %326 = vmatprep.subr.mxu0 0.0
        %327 = vmatpush2.msra.mxu0 0.0
        %328 = vmatprep.subr.mxu0 0.0
        %329 = vmatpush2.msra.mxu0 0.0
        %330 = vmatprep.subr.mxu0 0.0
        %331 = vmatpush2.msra.mxu0 0.0
        %332 = vmatprep.subr.mxu0 0.0
        %333 = vmatpush2.msra.mxu0 0.0
        %334 = vmatprep.subr.mxu0 0.0
        %335 = vmatpush2.msra.mxu0 0.0
        %336 = vmatprep.subr.mxu0 0.0
        %337 = vmatpush2.msra.mxu0 0.0
        %338 = vmatprep.subr.mxu0 0.0
        %339 = vmatpush2.msra.mxu0 0.0
        %340 = vmatprep.subr.mxu0 0.0
        %341 = vmatpush2.msra.mxu0 0.0
        %342 = vmatprep.subr.mxu0 0.0
        %343 = vmatpush2.msra.mxu0 0.0
        %344 = vmatprep.subr.mxu0 0.0
        %345 = vmatpush2.msra.mxu0 0.0
        %346 = vmatprep.subr.mxu0 0.0
        %347 = vmatpush2.msra.mxu0 0.0
        %348 = vmatprep.subr.mxu0 0.0
        %349 = vmatpush2.msra.mxu0 0.0
        %350 = vmatprep.subr.mxu0 0.0
        %351 = vmatpush2.msra.mxu0 0.0
        %352 = vmatprep.subr.mxu0 0.0
        %353 = vmatpush2.msra.mxu0 0.0
        %354 = vmatprep.subr.mxu0 0.0
        %355 = vmatpush2.msra.mxu0 0.0
        %356 = vmatprep.subr.mxu0 0.0
        %357 = vmatpush2.msra.mxu0 0.0
        %358 = vmatprep.mubr.f32.mxu0 0.0
        %359 = vmatmul.mubr.f32.gmra.mxu0 %v247
        %v360 = vpop.f32.mrf.mxu0
        %v361 = vadd.f32 %v243, %v360
        %v362 = vpop.f32.mrf.mxu0
        %363 = vmatprep.mubr.f32.mxu0 0.0
        %364 = vmatmul.mubr.f32.gmra.mxu0 %v250
        %v365 = vpop.f32.mrf.mxu0
        %v366 = vadd.f32 %v243, %v365
        %v367 = vpop.f32.mrf.mxu0
        %368 = vmatprep.mubr.f32.mxu0 0.0
        %369 = vmatmul.mubr.f32.gmra.mxu0 %v253
        %v370 = vpop.f32.mrf.mxu0
        %v371 = vadd.f32 %v243, %v370
        %v372 = vpop.f32.mrf.mxu0
        %373 = vmatprep.mubr.f32.mxu0 0.0
        %374 = vmatmul.mubr.f32.gmra.mxu0 %v256
        %v375 = vpop.f32.mrf.mxu0
        %v376 = vadd.f32 %v243, %v375
        %v377 = vpop.f32.mrf.mxu0
        %378 = vmatprep.mubr.f32.mxu0 0.0
        %379 = vmatmul.mubr.f32.gmra.mxu0 %v259
        %v380 = vpop.f32.mrf.mxu0
        %v381 = vadd.f32 %v243, %v380
        %v382 = vpop.f32.mrf.mxu0
        %383 = vmatprep.mubr.f32.mxu0 0.0
        %384 = vmatmul.mubr.f32.gmra.mxu0 %v262
        %v385 = vpop.f32.mrf.mxu0
        %v386 = vadd.f32 %v243, %v385
        %v387 = vpop.f32.mrf.mxu0
        %388 = vmatprep.mubr.f32.mxu0 0.0
        %389 = vmatmul.mubr.f32.gmra.mxu0 %v265
        %v390 = vpop.f32.mrf.mxu0
        %v391 = vadd.f32 %v243, %v390
        %v392 = vpop.f32.mrf.mxu0
        %393 = vmatprep.mubr.f32.mxu0 0.0
        %394 = vmatmul.mubr.f32.gmra.mxu0 %v268
        %v395 = vpop.f32.mrf.mxu0
        %v396 = vadd.f32 %v243, %v395
        %v397 = vpop.f32.mrf.mxu0
        %398 = vmatprep.mubr.f32.mxu0 0.0
        %399 = vmatmul.mubr.f32.gmra.mxu0 %v271
        %v400 = vpop.f32.mrf.mxu0
        %v401 = vadd.f32 %v243, %v400
        %v402 = vpop.f32.mrf.mxu0
        %403 = vmatprep.mubr.f32.mxu0 0.0
        %404 = vmatmul.mubr.f32.gmra.mxu0 %v274
        %v405 = vpop.f32.mrf.mxu0
        %v406 = vadd.f32 %v243, %v405
        %v407 = vpop.f32.mrf.mxu0
        %408 = vmatprep.mubr.f32.mxu0 0.0
        %409 = vmatmul.mubr.f32.gmra.mxu0 %v277
        %v410 = vpop.f32.mrf.mxu0
        %v411 = vadd.f32 %v243, %v410
        %v412 = vpop.f32.mrf.mxu0
        %413 = vmatprep.mubr.f32.mxu0 0.0
        %414 = vmatmul.mubr.f32.gmra.mxu0 %v280
        %v415 = vpop.f32.mrf.mxu0
        %v416 = vadd.f32 %v243, %v415
        %v417 = vpop.f32.mrf.mxu0
        %418 = vmatprep.mubr.f32.mxu0 0.0
        %419 = vmatmul.mubr.f32.gmra.mxu0 %v283
        %v420 = vpop.f32.mrf.mxu0
        %v421 = vadd.f32 %v243, %v420
        %v422 = vpop.f32.mrf.mxu0
        %423 = vmatprep.mubr.f32.mxu0 0.0
        %424 = vmatmul.mubr.f32.gmra.mxu0 %v286
        %v425 = vpop.f32.mrf.mxu0
        %v426 = vadd.f32 %v243, %v425
        %v427 = vpop.f32.mrf.mxu0
        %428 = vmatprep.mubr.f32.mxu0 0.0
        %429 = vmatmul.mubr.f32.gmra.mxu0 %v289
        %v430 = vpop.f32.mrf.mxu0
        %v431 = vadd.f32 %v243, %v430
        %v432 = vpop.f32.mrf.mxu0
        %433 = vmatprep.mubr.f32.mxu0 0.0
        %434 = vmatmul.mubr.f32.gmra.mxu0 %v292
        %v435 = vpop.f32.mrf.mxu0
        %v436 = vadd.f32 %v243, %v435
        %v437 = vpop.f32.mrf.mxu0
        %438 = vdwg.mxu0
        %v439 = vtanh.pop %v361
        %v440 = vtanh.pop %v366
        %v441 = vtanh.pop %v371
        %v442 = vtanh.pop %v376
        %v443 = vtanh.pop %v381
        %v444 = vtanh.pop %v386
        %v445 = vtanh.pop %v391
        %v446 = vtanh.pop %v396
        %v447 = vtanh.pop %v401
        %v448 = vtanh.pop %v406
        %v449 = vtanh.pop %v411
        %v450 = vtanh.pop %v416
        %v451 = vtanh.pop %v421
        %v452 = vtanh.pop %v426
        %v453 = vtanh.pop %v431
        %v454 = vtanh.pop %v436
        %v455 = vld [vmem:[%s1] sm:$0xff]
        %v456 = vld [vmem:[%s1 + $0x8] sm:$0xff]
        %v457 = vld [vmem:[%s1 + $0x10] sm:$0xff]
        %v458 = vld [vmem:[%s1 + $0x18] sm:$0xff]
        %v460 = vsel %vm245, %v439, 0
        %v463 = vsel %vm245, %v440, 0
        %v466 = vsel %vm245, %v441, 0
        %v469 = vsel %vm245, %v442, 0
        %v472 = vsel %vm245, %v443, 0
        %v475 = vsel %vm245, %v444, 0
        %v478 = vsel %vm245, %v445, 0
        %v481 = vsel %vm245, %v446, 0
        %v484 = vsel %vm245, %v447, 0
        %v487 = vsel %vm245, %v448, 0
        %v490 = vsel %vm245, %v449, 0
        %v493 = vsel %vm245, %v450, 0
        %v496 = vsel %vm245, %v451, 0
        %v499 = vsel %vm245, %v452, 0
        %v502 = vsel %vm245, %v453, 0
        %v505 = vsel %vm245, %v454, 0
        %507 = vmatprep.subr.mxu0 0.0
        %508 = vmatpush1.msra.mxu0 0.0
        %509 = vmatprep.subr.mxu0 0.0
        %510 = vmatpush1.msra.mxu0 0.0
        %511 = vmatprep.subr.mxu0 0.0
        %512 = vmatpush1.msra.mxu0 0.0
        %513 = vmatprep.subr.mxu0 0.0
        %514 = vmatpush1.msra.mxu0 0.0
        %515 = vmatprep.subr.mxu0 0.0
        %516 = vmatpush1.msra.mxu0 0.0
        %517 = vmatprep.subr.mxu0 0.0
        %518 = vmatpush1.msra.mxu0 0.0
        %519 = vmatprep.subr.mxu0 0.0
        %520 = vmatpush1.msra.mxu0 0.0
        %521 = vmatprep.subr.mxu0 0.0
        %522 = vmatpush1.msra.mxu0 0.0
        %523 = vmatprep.subr.mxu0 0.0
        %524 = vmatpush1.msra.mxu0 0.0
        %525 = vmatprep.subr.mxu0 0.0
        %526 = vmatpush1.msra.mxu0 0.0
        %527 = vmatprep.subr.mxu0 0.0
        %528 = vmatpush1.msra.mxu0 0.0
        %529 = vmatprep.subr.mxu0 0.0
        %530 = vmatpush1.msra.mxu0 0.0
        %531 = vmatprep.subr.mxu0 0.0
        %532 = vmatpush1.msra.mxu0 %v458
        %533 = vmatprep.subr.mxu0 0.0
        %534 = vmatpush1.msra.mxu0 %v457
        %535 = vmatprep.subr.mxu0 0.0
        %536 = vmatpush1.msra.mxu0 %v456
        %537 = vmatprep.subr.mxu0 0.0
        %538 = vmatpush1.msra.mxu0 %v455
        %539 = vmatprep.subr.mxu0 0.0
        %540 = vmatpush2.msra.mxu0 0.0
        %541 = vmatprep.subr.mxu0 0.0
        %542 = vmatpush2.msra.mxu0 0.0
        %543 = vmatprep.subr.mxu0 0.0
        %544 = vmatpush2.msra.mxu0 0.0
        %545 = vmatprep.subr.mxu0 0.0
        %546 = vmatpush2.msra.mxu0 0.0
        %547 = vmatprep.subr.mxu0 0.0
        %548 = vmatpush2.msra.mxu0 0.0
        %549 = vmatprep.subr.mxu0 0.0
        %550 = vmatpush2.msra.mxu0 0.0
        %551 = vmatprep.subr.mxu0 0.0
        %552 = vmatpush2.msra.mxu0 0.0
        %553 = vmatprep.subr.mxu0 0.0
        %554 = vmatpush2.msra.mxu0 0.0
        %555 = vmatprep.subr.mxu0 0.0
        %556 = vmatpush2.msra.mxu0 0.0
        %557 = vmatprep.subr.mxu0 0.0
        %558 = vmatpush2.msra.mxu0 0.0
        %559 = vmatprep.subr.mxu0 0.0
        %560 = vmatpush2.msra.mxu0 0.0
        %561 = vmatprep.subr.mxu0 0.0
        %562 = vmatpush2.msra.mxu0 0.0
        %563 = vmatprep.subr.mxu0 0.0
        %564 = vmatpush2.msra.mxu0 0.0
        %565 = vmatprep.subr.mxu0 0.0
        %566 = vmatpush2.msra.mxu0 0.0
        %567 = vmatprep.subr.mxu0 0.0
        %568 = vmatpush2.msra.mxu0 0.0
        %569 = vmatprep.subr.mxu0 0.0
        %570 = vmatpush2.msra.mxu0 0.0
        %571 = vmatprep.mubr.f32.mxu0 0.0
        %572 = vmatmul.mubr.f32.gmra.mxu0 %v460
        %v573 = vpop.f32.mrf.mxu0
        %v574 = vadd.f32 0.0, %v573
        %v575 = vpop.f32.mrf.mxu0
        %576 = vmatprep.mubr.f32.mxu0 0.0
        %577 = vmatmul.mubr.f32.gmra.mxu0 %v463
        %v578 = vpop.f32.mrf.mxu0
        %v579 = vadd.f32 0.0, %v578
        %v580 = vpop.f32.mrf.mxu0
        %581 = vmatprep.mubr.f32.mxu0 0.0
        %582 = vmatmul.mubr.f32.gmra.mxu0 %v466
        %v583 = vpop.f32.mrf.mxu0
        %v584 = vadd.f32 0.0, %v583
        %v585 = vpop.f32.mrf.mxu0
        %586 = vmatprep.mubr.f32.mxu0 0.0
        %587 = vmatmul.mubr.f32.gmra.mxu0 %v469
        %v588 = vpop.f32.mrf.mxu0
        %v589 = vadd.f32 0.0, %v588
        %v590 = vpop.f32.mrf.mxu0
        %591 = vmatprep.mubr.f32.mxu0 0.0
        %592 = vmatmul.mubr.f32.gmra.mxu0 %v472
        %v593 = vpop.f32.mrf.mxu0
        %v594 = vadd.f32 0.0, %v593
        %v595 = vpop.f32.mrf.mxu0
        %596 = vmatprep.mubr.f32.mxu0 0.0
        %597 = vmatmul.mubr.f32.gmra.mxu0 %v475
        %v598 = vpop.f32.mrf.mxu0
        %v599 = vadd.f32 0.0, %v598
        %v600 = vpop.f32.mrf.mxu0
        %601 = vmatprep.mubr.f32.mxu0 0.0
        %602 = vmatmul.mubr.f32.gmra.mxu0 %v478
        %v603 = vpop.f32.mrf.mxu0
        %v604 = vadd.f32 0.0, %v603
        %v605 = vpop.f32.mrf.mxu0
        %606 = vmatprep.mubr.f32.mxu0 0.0
        %607 = vmatmul.mubr.f32.gmra.mxu0 %v481
        %v608 = vpop.f32.mrf.mxu0
        %v609 = vadd.f32 0.0, %v608
        %v610 = vpop.f32.mrf.mxu0
        %611 = vmatprep.mubr.f32.mxu0 0.0
        %612 = vmatmul.mubr.f32.gmra.mxu0 %v484
        %v613 = vpop.f32.mrf.mxu0
        %v614 = vadd.f32 0.0, %v613
        %v615 = vpop.f32.mrf.mxu0
        %616 = vmatprep.mubr.f32.mxu0 0.0
        %617 = vmatmul.mubr.f32.gmra.mxu0 %v487
        %v618 = vpop.f32.mrf.mxu0
        %v619 = vadd.f32 0.0, %v618
        %v620 = vpop.f32.mrf.mxu0
        %621 = vmatprep.mubr.f32.mxu0 0.0
        %622 = vmatmul.mubr.f32.gmra.mxu0 %v490
        %v623 = vpop.f32.mrf.mxu0
        %v624 = vadd.f32 0.0, %v623
        %v625 = vpop.f32.mrf.mxu0
        %626 = vmatprep.mubr.f32.mxu0 0.0
        %627 = vmatmul.mubr.f32.gmra.mxu0 %v493
        %v628 = vpop.f32.mrf.mxu0
        %v629 = vadd.f32 0.0, %v628
        %v630 = vpop.f32.mrf.mxu0
        %631 = vmatprep.mubr.f32.mxu0 0.0
        %632 = vmatmul.mubr.f32.gmra.mxu0 %v496
        %v633 = vpop.f32.mrf.mxu0
        %v634 = vadd.f32 0.0, %v633
        %v635 = vpop.f32.mrf.mxu0
        %636 = vmatprep.mubr.f32.mxu0 0.0
        %637 = vmatmul.mubr.f32.gmra.mxu0 %v499
        %v638 = vpop.f32.mrf.mxu0
        %v639 = vadd.f32 0.0, %v638
        %v640 = vpop.f32.mrf.mxu0
        %641 = vmatprep.mubr.f32.mxu0 0.0
        %642 = vmatmul.mubr.f32.gmra.mxu0 %v502
        %v643 = vpop.f32.mrf.mxu0
        %v644 = vadd.f32 0.0, %v643
        %v645 = vpop.f32.mrf.mxu0
        %646 = vmatprep.mubr.f32.mxu0 0.0
        %647 = vmatmul.mubr.f32.gmra.mxu0 %v505
        %v648 = vpop.f32.mrf.mxu0
        %v649 = vadd.f32 0.0, %v648
        %v650 = vpop.f32.mrf.mxu0
        %651 = vdwg.mxu0
        %vm652 = vcmask 64512
        %v653 = vsel %vm652, %v574, -inf
        %v654 = vrot.slane %v653, 4
        %v655 = vmax.f32 %v653, %v654
        %v656 = vrot.slane %v655, 2
        %v657 = vmax.f32 %v655, %v656
        %v658 = vrot.slane %v657, 1
        %v659 = vmax.f32 %v657, %v658
        %v660 = vsel %vm652, %v579, -inf
        %v661 = vrot.slane %v660, 4
        %v662 = vmax.f32 %v660, %v661
        %v663 = vrot.slane %v662, 2
        %v664 = vmax.f32 %v662, %v663
        %v665 = vrot.slane %v664, 1
        %v666 = vmax.f32 %v664, %v665
        %v667 = vsel %vm652, %v584, -inf
        %v668 = vrot.slane %v667, 4
        %v669 = vmax.f32 %v667, %v668
        %v670 = vrot.slane %v669, 2
        %v671 = vmax.f32 %v669, %v670
        %v672 = vrot.slane %v671, 1
        %v673 = vmax.f32 %v671, %v672
        %v674 = vsel %vm652, %v589, -inf
        %v675 = vrot.slane %v674, 4
        %v676 = vmax.f32 %v674, %v675
        %v677 = vrot.slane %v676, 2
        %v678 = vmax.f32 %v676, %v677
        %v679 = vrot.slane %v678, 1
        %v680 = vmax.f32 %v678, %v679
        %v681 = vsel %vm652, %v594, -inf
        %v682 = vrot.slane %v681, 4
        %v683 = vmax.f32 %v681, %v682
        %v684 = vrot.slane %v683, 2
        %v685 = vmax.f32 %v683, %v684
        %v686 = vrot.slane %v685, 1
        %v687 = vmax.f32 %v685, %v686
        %v688 = vsel %vm652, %v599, -inf
        %v689 = vrot.slane %v688, 4
        %v690 = vmax.f32 %v688, %v689
        %v691 = vrot.slane %v690, 2
        %v692 = vmax.f32 %v690, %v691
        %v693 = vrot.slane %v692, 1
        %v694 = vmax.f32 %v692, %v693
        %v695 = vsel %vm652, %v604, -inf
        %v696 = vrot.slane %v695, 4
        %v697 = vmax.f32 %v695, %v696
        %v698 = vrot.slane %v697, 2
        %v699 = vmax.f32 %v697, %v698
        %v700 = vrot.slane %v699, 1
        %v701 = vmax.f32 %v699, %v700
        %v702 = vsel %vm652, %v609, -inf
        %v703 = vrot.slane %v702, 4
        %v704 = vmax.f32 %v702, %v703
        %v705 = vrot.slane %v704, 2
        %v706 = vmax.f32 %v704, %v705
        %v707 = vrot.slane %v706, 1
        %v708 = vmax.f32 %v706, %v707
        %v709 = vsel %vm652, %v614, -inf
        %v710 = vrot.slane %v709, 4
        %v711 = vmax.f32 %v709, %v710
        %v712 = vrot.slane %v711, 2
        %v713 = vmax.f32 %v711, %v712
        %v714 = vrot.slane %v713, 1
        %v715 = vmax.f32 %v713, %v714
        %v716 = vsel %vm652, %v619, -inf
        %v717 = vrot.slane %v716, 4
        %v718 = vmax.f32 %v716, %v717
        %v719 = vrot.slane %v718, 2
        %v720 = vmax.f32 %v718, %v719
        %v721 = vrot.slane %v720, 1
        %v722 = vmax.f32 %v720, %v721
        %v723 = vsel %vm652, %v624, -inf
        %v724 = vrot.slane %v723, 4
        %v725 = vmax.f32 %v723, %v724
        %v726 = vrot.slane %v725, 2
        %v727 = vmax.f32 %v725, %v726
        %v728 = vrot.slane %v727, 1
        %v729 = vmax.f32 %v727, %v728
        %v730 = vsel %vm652, %v629, -inf
        %v731 = vrot.slane %v730, 4
        %v732 = vmax.f32 %v730, %v731
        %v733 = vrot.slane %v732, 2
        %v734 = vmax.f32 %v732, %v733
        %v735 = vrot.slane %v734, 1
        %v736 = vmax.f32 %v734, %v735
        %v737 = vsel %vm652, %v634, -inf
        %v738 = vrot.slane %v737, 4
        %v739 = vmax.f32 %v737, %v738
        %v740 = vrot.slane %v739, 2
        %v741 = vmax.f32 %v739, %v740
        %v742 = vrot.slane %v741, 1
        %v743 = vmax.f32 %v741, %v742
        %v744 = vsel %vm652, %v639, -inf
        %v745 = vrot.slane %v744, 4
        %v746 = vmax.f32 %v744, %v745
        %v747 = vrot.slane %v746, 2
        %v748 = vmax.f32 %v746, %v747
        %v749 = vrot.slane %v748, 1
        %v750 = vmax.f32 %v748, %v749
        %v751 = vsel %vm652, %v644, -inf
        %v752 = vrot.slane %v751, 4
        %v753 = vmax.f32 %v751, %v752
        %v754 = vrot.slane %v753, 2
        %v755 = vmax.f32 %v753, %v754
        %v756 = vrot.slane %v755, 1
        %v757 = vmax.f32 %v755, %v756
        %v758 = vsel %vm652, %v649, -inf
        %v759 = vrot.slane %v758, 4
        %v760 = vmax.f32 %v758, %v759
        %v761 = vrot.slane %v760, 2
        %v762 = vmax.f32 %v760, %v761
        %v763 = vrot.slane %v762, 1
        %v764 = vmax.f32 %v762, %v763
        %v765 = vsub.f32 %v574, %v659
        %v766 = vsub.f32 %v579, %v666
        %v767 = vsub.f32 %v584, %v673
        %v768 = vsub.f32 %v589, %v680
        %v769 = vsub.f32 %v594, %v687
        %v770 = vsub.f32 %v599, %v694
        %v771 = vsub.f32 %v604, %v701
        %v772 = vsub.f32 %v609, %v708
        %v773 = vsub.f32 %v614, %v715
        %v774 = vsub.f32 %v619, %v722
        %v775 = vsub.f32 %v624, %v729
        %v776 = vsub.f32 %v629, %v736
        %v777 = vsub.f32 %v634, %v743
        %v778 = vsub.f32 %v639, %v750
        %v779 = vsub.f32 %v644, %v757
        %v780 = vsub.f32 %v649, %v764
        %v781 = vmul.f32 %v765, 1.442695
        %v782 = vpow.pop %v781
        %v783 = vmul.f32 %v766, 1.442695
        %v784 = vpow.pop %v783
        %v785 = vmul.f32 %v767, 1.442695
        %v786 = vpow.pop %v785
        %v787 = vmul.f32 %v768, 1.442695
        %v788 = vpow.pop %v787
        %v789 = vmul.f32 %v769, 1.442695
        %v790 = vpow.pop %v789
        %v791 = vmul.f32 %v770, 1.442695
        %v792 = vpow.pop %v791
        %v793 = vmul.f32 %v771, 1.442695
        %v794 = vpow.pop %v793
        %v795 = vmul.f32 %v772, 1.442695
        %v796 = vpow.pop %v795
        %v797 = vmul.f32 %v773, 1.442695
        %v798 = vpow.pop %v797
        %v799 = vmul.f32 %v774, 1.442695
        %v800 = vpow.pop %v799
        %v801 = vmul.f32 %v775, 1.442695
        %v802 = vpow.pop %v801
        %v803 = vmul.f32 %v776, 1.442695
        %v804 = vpow.pop %v803
        %v805 = vmul.f32 %v777, 1.442695
        %v806 = vpow.pop %v805
        %v807 = vmul.f32 %v778, 1.442695
        %v808 = vpow.pop %v807
        %v809 = vmul.f32 %v779, 1.442695
        %v810 = vpow.pop %v809
        %v811 = vmul.f32 %v780, 1.442695
        %v812 = vpow.pop %v811
        %v813 = vsel %vm652, %v782, 0.0
        %v814 = vrot.slane %v813, 4
        %v815 = vadd.f32 %v813, %v814
        %v816 = vrot.slane %v815, 2
        %v817 = vadd.f32 %v815, %v816
        %v818 = vrot.slane %v817, 1
        %v819 = vadd.f32 %v817, %v818
        %v820 = vsel %vm652, %v784, 0.0
        %v821 = vrot.slane %v820, 4
        %v822 = vadd.f32 %v820, %v821
        %v823 = vrot.slane %v822, 2
        %v824 = vadd.f32 %v822, %v823
        %v825 = vrot.slane %v824, 1
        %v826 = vadd.f32 %v824, %v825
        %v827 = vsel %vm652, %v786, 0.0
        %v828 = vrot.slane %v827, 4
        %v829 = vadd.f32 %v827, %v828
        %v830 = vrot.slane %v829, 2
        %v831 = vadd.f32 %v829, %v830
        %v832 = vrot.slane %v831, 1
        %v833 = vadd.f32 %v831, %v832
        %v834 = vsel %vm652, %v788, 0.0
        %v835 = vrot.slane %v834, 4
        %v836 = vadd.f32 %v834, %v835
        %v837 = vrot.slane %v836, 2
        %v838 = vadd.f32 %v836, %v837
        %v839 = vrot.slane %v838, 1
        %v840 = vadd.f32 %v838, %v839
        %v841 = vsel %vm652, %v790, 0.0
        %v842 = vrot.slane %v841, 4
        %v843 = vadd.f32 %v841, %v842
        %v844 = vrot.slane %v843, 2
        %v845 = vadd.f32 %v843, %v844
        %v846 = vrot.slane %v845, 1
        %v847 = vadd.f32 %v845, %v846
        %v848 = vsel %vm652, %v792, 0.0
        %v849 = vrot.slane %v848, 4
        %v850 = vadd.f32 %v848, %v849
        %v851 = vrot.slane %v850, 2
        %v852 = vadd.f32 %v850, %v851
        %v853 = vrot.slane %v852, 1
        %v854 = vadd.f32 %v852, %v853
        %v855 = vsel %vm652, %v794, 0.0
        %v856 = vrot.slane %v855, 4
        %v857 = vadd.f32 %v855, %v856
        %v858 = vrot.slane %v857, 2
        %v859 = vadd.f32 %v857, %v858
        %v860 = vrot.slane %v859, 1
        %v861 = vadd.f32 %v859, %v860
        %v862 = vsel %vm652, %v796, 0.0
        %v863 = vrot.slane %v862, 4
        %v864 = vadd.f32 %v862, %v863
        %v865 = vrot.slane %v864, 2
        %v866 = vadd.f32 %v864, %v865
        %v867 = vrot.slane %v866, 1
        %v868 = vadd.f32 %v866, %v867
        %v869 = vsel %vm652, %v798, 0.0
        %v870 = vrot.slane %v869, 4
        %v871 = vadd.f32 %v869, %v870
        %v872 = vrot.slane %v871, 2
        %v873 = vadd.f32 %v871, %v872
        %v874 = vrot.slane %v873, 1
        %v875 = vadd.f32 %v873, %v874
        %v876 = vsel %vm652, %v800, 0.0
        %v877 = vrot.slane %v876, 4
        %v878 = vadd.f32 %v876, %v877
        %v879 = vrot.slane %v878, 2
        %v880 = vadd.f32 %v878, %v879
        %v881 = vrot.slane %v880, 1
        %v882 = vadd.f32 %v880, %v881
        %v883 = vsel %vm652, %v802, 0.0
        %v884 = vrot.slane %v883, 4
        %v885 = vadd.f32 %v883, %v884
        %v886 = vrot.slane %v885, 2
        %v887 = vadd.f32 %v885, %v886
        %v888 = vrot.slane %v887, 1
        %v889 = vadd.f32 %v887, %v888
        %v890 = vsel %vm652, %v804, 0.0
        %v891 = vrot.slane %v890, 4
        %v892 = vadd.f32 %v890, %v891
        %v893 = vrot.slane %v892, 2
        %v894 = vadd.f32 %v892, %v893
        %v895 = vrot.slane %v894, 1
        %v896 = vadd.f32 %v894, %v895
        %v897 = vsel %vm652, %v806, 0.0
        %v898 = vrot.slane %v897, 4
        %v899 = vadd.f32 %v897, %v898
        %v900 = vrot.slane %v899, 2
        %v901 = vadd.f32 %v899, %v900
        %v902 = vrot.slane %v901, 1
        %v903 = vadd.f32 %v901, %v902
        %v904 = vsel %vm652, %v808, 0.0
        %v905 = vrot.slane %v904, 4
        %v906 = vadd.f32 %v904, %v905
        %v907 = vrot.slane %v906, 2
        %v908 = vadd.f32 %v906, %v907
        %v909 = vrot.slane %v908, 1
        %v910 = vadd.f32 %v908, %v909
        %v911 = vsel %vm652, %v810, 0.0
        %v912 = vrot.slane %v911, 4
        %v913 = vadd.f32 %v911, %v912
        %v914 = vrot.slane %v913, 2
        %v915 = vadd.f32 %v913, %v914
        %v916 = vrot.slane %v915, 1
        %v917 = vadd.f32 %v915, %v916
        %v918 = vsel %vm652, %v812, 0.0
        %v919 = vrot.slane %v918, 4
        %v920 = vadd.f32 %v918, %v919
        %v921 = vrot.slane %v920, 2
        %v922 = vadd.f32 %v920, %v921
        %v923 = vrot.slane %v922, 1
        %v924 = vadd.f32 %v922, %v923
        %v925 = vrcp.pop %v819
        %v926 = vrcp.pop %v826
        %v927 = vrcp.pop %v833
        %v928 = vrcp.pop %v840
        %v929 = vrcp.pop %v847
        %v930 = vrcp.pop %v854
        %v931 = vrcp.pop %v861
        %v932 = vrcp.pop %v868
        %v933 = vrcp.pop %v875
        %v934 = vrcp.pop %v882
        %v935 = vrcp.pop %v889
        %v936 = vrcp.pop %v896
        %v937 = vrcp.pop %v903
        %v938 = vrcp.pop %v910
        %v939 = vrcp.pop %v917
        %v940 = vrcp.pop %v924
        %v941 = vmul.f32 %v782, %v925
        %v942 = vmul.f32 %v784, %v926
        %v943 = vmul.f32 %v786, %v927
        %v944 = vmul.f32 %v788, %v928
        %v945 = vmul.f32 %v790, %v929
        %v946 = vmul.f32 %v792, %v930
        %v947 = vmul.f32 %v794, %v931
        %v948 = vmul.f32 %v796, %v932
        %v949 = vmul.f32 %v798, %v933
        %v950 = vmul.f32 %v800, %v934
        %v951 = vmul.f32 %v802, %v935
        %v952 = vmul.f32 %v804, %v936
        %v953 = vmul.f32 %v806, %v937
        %v954 = vmul.f32 %v808, %v938
        %v955 = vmul.f32 %v810, %v939
        %v956 = vmul.f32 %v812, %v940
        %957 = vxpose.xlu0.b32.start [1/16] %v941, 128
        %958 = vxpose.xlu0.b32.cont [2/16] 0.0, 128
        %959 = vxpose.xlu0.b32.cont [3/16] 0.0, 128
        %960 = vxpose.xlu0.b32.cont [4/16] 0.0, 128
        %961 = vxpose.xlu0.b32.cont [5/16] 0.0, 128
        %962 = vxpose.xlu0.b32.cont [6/16] 0.0, 128
        %963 = vxpose.xlu0.b32.cont [7/16] 0.0, 128
        %964 = vxpose.xlu0.b32.cont [8/16] 0.0, 128
        %965 = vxpose.xlu0.b32.cont [9/16] 0.0, 128
        %966 = vxpose.xlu0.b32.cont [10/16] 0.0, 128
        %967 = vxpose.xlu0.b32.cont [11/16] 0.0, 128
        %968 = vxpose.xlu0.b32.cont [12/16] 0.0, 128
        %969 = vxpose.xlu0.b32.cont [13/16] 0.0, 128
        %970 = vxpose.xlu0.b32.cont [14/16] 0.0, 128
        %971 = vxpose.xlu0.b32.cont [15/16] 0.0, 128
        %972 = vxpose.xlu0.b32.end [16/16] 0.0, 128
        %v973 = vpop.trf.xlu0
        %v974 = vpop.trf.xlu0
        %v975 = vpop.trf.xlu0
        %v976 = vpop.trf.xlu0
        %v977 = vpop.trf.xlu0
        %v978 = vpop.trf.xlu0
        %v979 = vpop.trf.xlu0
        %v980 = vpop.trf.xlu0
        %v981 = vpop.trf.xlu0
        %v982 = vpop.trf.xlu0
        %v983 = vpop.trf.xlu0
        %v984 = vpop.trf.xlu0
        %v985 = vpop.trf.xlu0
        %v986 = vpop.trf.xlu0
        %v987 = vpop.trf.xlu0
        %v988 = vpop.trf.xlu0
        %v990 = vsel %vm652, %v973, 0
        %992 = vmatprep.subr.mxu0 0.0
        %993 = vmatpush1.msra.mxu0 0.0
        %994 = vmatprep.subr.mxu0 0.0
        %995 = vmatpush1.msra.mxu0 0.0
        %996 = vmatprep.subr.mxu0 0.0
        %997 = vmatpush1.msra.mxu0 0.0
        %998 = vmatprep.subr.mxu0 0.0
        %999 = vmatpush1.msra.mxu0 0.0
        %1000 = vmatprep.subr.mxu0 0.0
        %1001 = vmatpush1.msra.mxu0 0.0
        %1002 = vmatprep.subr.mxu0 0.0
        %1003 = vmatpush1.msra.mxu0 0.0
        %1004 = vmatprep.subr.mxu0 0.0
        %1005 = vmatpush1.msra.mxu0 0.0
        %1006 = vmatprep.subr.mxu0 0.0
        %1007 = vmatpush1.msra.mxu0 0.0
        %1008 = vmatprep.subr.mxu0 0.0
        %1009 = vmatpush1.msra.mxu0 0.0
        %1010 = vmatprep.subr.mxu0 0.0
        %1011 = vmatpush1.msra.mxu0 0.0
        %1012 = vmatprep.subr.mxu0 0.0
        %1013 = vmatpush1.msra.mxu0 0.0
        %1014 = vmatprep.subr.mxu0 0.0
        %1015 = vmatpush1.msra.mxu0 0.0
        %1016 = vmatprep.subr.mxu0 0.0
        %1017 = vmatpush1.msra.mxu0 0.0
        %1018 = vmatprep.subr.mxu0 0.0
        %1019 = vmatpush1.msra.mxu0 0.0
        %1020 = vmatprep.subr.mxu0 0.0
        %1021 = vmatpush1.msra.mxu0 0.0
        %1022 = vmatprep.subr.mxu0 0.0
        %1023 = vmatpush1.msra.mxu0 %v218
        %1024 = vmatprep.subr.mxu0 0.0
        %1025 = vmatpush2.msra.mxu0 0.0
        %1026 = vmatprep.subr.mxu0 0.0
        %1027 = vmatpush2.msra.mxu0 0.0
        %1028 = vmatprep.subr.mxu0 0.0
        %1029 = vmatpush2.msra.mxu0 0.0
        %1030 = vmatprep.subr.mxu0 0.0
        %1031 = vmatpush2.msra.mxu0 0.0
        %1032 = vmatprep.subr.mxu0 0.0
        %1033 = vmatpush2.msra.mxu0 0.0
        %1034 = vmatprep.subr.mxu0 0.0
        %1035 = vmatpush2.msra.mxu0 0.0
        %1036 = vmatprep.subr.mxu0 0.0
        %1037 = vmatpush2.msra.mxu0 0.0
        %1038 = vmatprep.subr.mxu0 0.0
        %1039 = vmatpush2.msra.mxu0 0.0
        %1040 = vmatprep.subr.mxu0 0.0
        %1041 = vmatpush2.msra.mxu0 0.0
        %1042 = vmatprep.subr.mxu0 0.0
        %1043 = vmatpush2.msra.mxu0 0.0
        %1044 = vmatprep.subr.mxu0 0.0
        %1045 = vmatpush2.msra.mxu0 0.0
        %1046 = vmatprep.subr.mxu0 0.0
        %1047 = vmatpush2.msra.mxu0 0.0
        %1048 = vmatprep.subr.mxu0 0.0
        %1049 = vmatpush2.msra.mxu0 0.0
        %1050 = vmatprep.subr.mxu0 0.0
        %1051 = vmatpush2.msra.mxu0 0.0
        %1052 = vmatprep.subr.mxu0 0.0
        %1053 = vmatpush2.msra.mxu0 0.0
        %1054 = vmatprep.subr.mxu0 0.0
        %1055 = vmatpush2.msra.mxu0 0.0
        %1056 = vmatprep.mubr.f32.mxu0 0.0
        %1057 = vmatmul.mubr.f32.gmra.mxu0 %v990
        %v1058 = vpop.f32.mrf.mxu0
        %v1059 = vadd.f32 0.0, %v1058
        %v1060 = vpop.f32.mrf.mxu0
        %1061 = vdwg.mxu0
        %1062 = vxpose.xlu0.b32.start [1/16] %v942, 128
        %1063 = vxpose.xlu0.b32.cont [2/16] 0.0, 128
        %1064 = vxpose.xlu0.b32.cont [3/16] 0.0, 128
        %1065 = vxpose.xlu0.b32.cont [4/16] 0.0, 128
        %1066 = vxpose.xlu0.b32.cont [5/16] 0.0, 128
        %1067 = vxpose.xlu0.b32.cont [6/16] 0.0, 128
        %1068 = vxpose.xlu0.b32.cont [7/16] 0.0, 128
        %1069 = vxpose.xlu0.b32.cont [8/16] 0.0, 128
        %1070 = vxpose.xlu0.b32.cont [9/16] 0.0, 128
        %1071 = vxpose.xlu0.b32.cont [10/16] 0.0, 128
        %1072 = vxpose.xlu0.b32.cont [11/16] 0.0, 128
        %1073 = vxpose.xlu0.b32.cont [12/16] 0.0, 128
        %1074 = vxpose.xlu0.b32.cont [13/16] 0.0, 128
        %1075 = vxpose.xlu0.b32.cont [14/16] 0.0, 128
        %1076 = vxpose.xlu0.b32.cont [15/16] 0.0, 128
        %1077 = vxpose.xlu0.b32.end [16/16] 0.0, 128
        %v1078 = vpop.trf.xlu0
        %v1079 = vpop.trf.xlu0
        %v1080 = vpop.trf.xlu0
        %v1081 = vpop.trf.xlu0
        %v1082 = vpop.trf.xlu0
        %v1083 = vpop.trf.xlu0
        %v1084 = vpop.trf.xlu0
        %v1085 = vpop.trf.xlu0
        %v1086 = vpop.trf.xlu0
        %v1087 = vpop.trf.xlu0
        %v1088 = vpop.trf.xlu0
        %v1089 = vpop.trf.xlu0
        %v1090 = vpop.trf.xlu0
        %v1091 = vpop.trf.xlu0
        %v1092 = vpop.trf.xlu0
        %v1093 = vpop.trf.xlu0
        %v1095 = vsel %vm652, %v1078, 0
        %1097 = vmatprep.subr.mxu0 0.0
        %1098 = vmatpush1.msra.mxu0 0.0
        %1099 = vmatprep.subr.mxu0 0.0
        %1100 = vmatpush1.msra.mxu0 0.0
        %1101 = vmatprep.subr.mxu0 0.0
        %1102 = vmatpush1.msra.mxu0 0.0
        %1103 = vmatprep.subr.mxu0 0.0
        %1104 = vmatpush1.msra.mxu0 0.0
        %1105 = vmatprep.subr.mxu0 0.0
        %1106 = vmatpush1.msra.mxu0 0.0
        %1107 = vmatprep.subr.mxu0 0.0
        %1108 = vmatpush1.msra.mxu0 0.0
        %1109 = vmatprep.subr.mxu0 0.0
        %1110 = vmatpush1.msra.mxu0 0.0
        %1111 = vmatprep.subr.mxu0 0.0
        %1112 = vmatpush1.msra.mxu0 0.0
        %1113 = vmatprep.subr.mxu0 0.0
        %1114 = vmatpush1.msra.mxu0 0.0
        %1115 = vmatprep.subr.mxu0 0.0
        %1116 = vmatpush1.msra.mxu0 0.0
        %1117 = vmatprep.subr.mxu0 0.0
        %1118 = vmatpush1.msra.mxu0 0.0
        %1119 = vmatprep.subr.mxu0 0.0
        %1120 = vmatpush1.msra.mxu0 0.0
        %1121 = vmatprep.subr.mxu0 0.0
        %1122 = vmatpush1.msra.mxu0 0.0
        %1123 = vmatprep.subr.mxu0 0.0
        %1124 = vmatpush1.msra.mxu0 0.0
        %1125 = vmatprep.subr.mxu0 0.0
        %1126 = vmatpush1.msra.mxu0 0.0
        %1127 = vmatprep.subr.mxu0 0.0
        %1128 = vmatpush1.msra.mxu0 %v219
        %1129 = vmatprep.subr.mxu0 0.0
        %1130 = vmatpush2.msra.mxu0 0.0
        %1131 = vmatprep.subr.mxu0 0.0
        %1132 = vmatpush2.msra.mxu0 0.0
        %1133 = vmatprep.subr.mxu0 0.0
        %1134 = vmatpush2.msra.mxu0 0.0
        %1135 = vmatprep.subr.mxu0 0.0
        %1136 = vmatpush2.msra.mxu0 0.0
        %1137 = vmatprep.subr.mxu0 0.0
        %1138 = vmatpush2.msra.mxu0 0.0
        %1139 = vmatprep.subr.mxu0 0.0
        %1140 = vmatpush2.msra.mxu0 0.0
        %1141 = vmatprep.subr.mxu0 0.0
        %1142 = vmatpush2.msra.mxu0 0.0
        %1143 = vmatprep.subr.mxu0 0.0
        %1144 = vmatpush2.msra.mxu0 0.0
        %1145 = vmatprep.subr.mxu0 0.0
        %1146 = vmatpush2.msra.mxu0 0.0
        %1147 = vmatprep.subr.mxu0 0.0
        %1148 = vmatpush2.msra.mxu0 0.0
        %1149 = vmatprep.subr.mxu0 0.0
        %1150 = vmatpush2.msra.mxu0 0.0
        %1151 = vmatprep.subr.mxu0 0.0
        %1152 = vmatpush2.msra.mxu0 0.0
        %1153 = vmatprep.subr.mxu0 0.0
        %1154 = vmatpush2.msra.mxu0 0.0
        %1155 = vmatprep.subr.mxu0 0.0
        %1156 = vmatpush2.msra.mxu0 0.0
        %1157 = vmatprep.subr.mxu0 0.0
        %1158 = vmatpush2.msra.mxu0 0.0
        %1159 = vmatprep.subr.mxu0 0.0
        %1160 = vmatpush2.msra.mxu0 0.0
        %1161 = vmatprep.mubr.f32.mxu0 0.0
        %1162 = vmatmul.mubr.f32.gmra.mxu0 %v1095
        %v1163 = vpop.f32.mrf.mxu0
        %v1164 = vadd.f32 0.0, %v1163
        %v1165 = vpop.f32.mrf.mxu0
        %1166 = vdwg.mxu0
        %1167 = vxpose.xlu0.b32.start [1/16] %v943, 128
        %1168 = vxpose.xlu0.b32.cont [2/16] 0.0, 128
        %1169 = vxpose.xlu0.b32.cont [3/16] 0.0, 128
        %1170 = vxpose.xlu0.b32.cont [4/16] 0.0, 128
        %1171 = vxpose.xlu0.b32.cont [5/16] 0.0, 128
        %1172 = vxpose.xlu0.b32.cont [6/16] 0.0, 128
        %1173 = vxpose.xlu0.b32.cont [7/16] 0.0, 128
        %1174 = vxpose.xlu0.b32.cont [8/16] 0.0, 128
        %1175 = vxpose.xlu0.b32.cont [9/16] 0.0, 128
        %1176 = vxpose.xlu0.b32.cont [10/16] 0.0, 128
        %1177 = vxpose.xlu0.b32.cont [11/16] 0.0, 128
        %1178 = vxpose.xlu0.b32.cont [12/16] 0.0, 128
        %1179 = vxpose.xlu0.b32.cont [13/16] 0.0, 128
        %1180 = vxpose.xlu0.b32.cont [14/16] 0.0, 128
        %1181 = vxpose.xlu0.b32.cont [15/16] 0.0, 128
        %1182 = vxpose.xlu0.b32.end [16/16] 0.0, 128
        %v1183 = vpop.trf.xlu0
        %v1184 = vpop.trf.xlu0
        %v1185 = vpop.trf.xlu0
        %v1186 = vpop.trf.xlu0
        %v1187 = vpop.trf.xlu0
        %v1188 = vpop.trf.xlu0
        %v1189 = vpop.trf.xlu0
        %v1190 = vpop.trf.xlu0
        %v1191 = vpop.trf.xlu0
        %v1192 = vpop.trf.xlu0
        %v1193 = vpop.trf.xlu0
        %v1194 = vpop.trf.xlu0
        %v1195 = vpop.trf.xlu0
        %v1196 = vpop.trf.xlu0
        %v1197 = vpop.trf.xlu0
        %v1198 = vpop.trf.xlu0
        %v1200 = vsel %vm652, %v1183, 0
        %1202 = vmatprep.subr.mxu0 0.0
        %1203 = vmatpush1.msra.mxu0 0.0
        %1204 = vmatprep.subr.mxu0 0.0
        %1205 = vmatpush1.msra.mxu0 0.0
        %1206 = vmatprep.subr.mxu0 0.0
        %1207 = vmatpush1.msra.mxu0 0.0
        %1208 = vmatprep.subr.mxu0 0.0
        %1209 = vmatpush1.msra.mxu0 0.0
        %1210 = vmatprep.subr.mxu0 0.0
        %1211 = vmatpush1.msra.mxu0 0.0
        %1212 = vmatprep.subr.mxu0 0.0
        %1213 = vmatpush1.msra.mxu0 0.0
        %1214 = vmatprep.subr.mxu0 0.0
        %1215 = vmatpush1.msra.mxu0 0.0
        %1216 = vmatprep.subr.mxu0 0.0
        %1217 = vmatpush1.msra.mxu0 0.0
        %1218 = vmatprep.subr.mxu0 0.0
        %1219 = vmatpush1.msra.mxu0 0.0
        %1220 = vmatprep.subr.mxu0 0.0
        %1221 = vmatpush1.msra.mxu0 0.0
        %1222 = vmatprep.subr.mxu0 0.0
        %1223 = vmatpush1.msra.mxu0 0.0
        %1224 = vmatprep.subr.mxu0 0.0
        %1225 = vmatpush1.msra.mxu0 0.0
        %1226 = vmatprep.subr.mxu0 0.0
        %1227 = vmatpush1.msra.mxu0 0.0
        %1228 = vmatprep.subr.mxu0 0.0
        %1229 = vmatpush1.msra.mxu0 0.0
        %1230 = vmatprep.subr.mxu0 0.0
        %1231 = vmatpush1.msra.mxu0 0.0
        %1232 = vmatprep.subr.mxu0 0.0
        %1233 = vmatpush1.msra.mxu0 %v220
        %1234 = vmatprep.subr.mxu0 0.0
        %1235 = vmatpush2.msra.mxu0 0.0
        %1236 = vmatprep.subr.mxu0 0.0
        %1237 = vmatpush2.msra.mxu0 0.0
        %1238 = vmatprep.subr.mxu0 0.0
        %1239 = vmatpush2.msra.mxu0 0.0
        %1240 = vmatprep.subr.mxu0 0.0
        %1241 = vmatpush2.msra.mxu0 0.0
        %1242 = vmatprep.subr.mxu0 0.0
        %1243 = vmatpush2.msra.mxu0 0.0
        %1244 = vmatprep.subr.mxu0 0.0
        %1245 = vmatpush2.msra.mxu0 0.0
        %1246 = vmatprep.subr.mxu0 0.0
        %1247 = vmatpush2.msra.mxu0 0.0
        %1248 = vmatprep.subr.mxu0 0.0
        %1249 = vmatpush2.msra.mxu0 0.0
        %1250 = vmatprep.subr.mxu0 0.0
        %1251 = vmatpush2.msra.mxu0 0.0
        %1252 = vmatprep.subr.mxu0 0.0
        %1253 = vmatpush2.msra.mxu0 0.0
        %1254 = vmatprep.subr.mxu0 0.0
        %1255 = vmatpush2.msra.mxu0 0.0
        %1256 = vmatprep.subr.mxu0 0.0
        %1257 = vmatpush2.msra.mxu0 0.0
        %1258 = vmatprep.subr.mxu0 0.0
        %1259 = vmatpush2.msra.mxu0 0.0
        %1260 = vmatprep.subr.mxu0 0.0
        %1261 = vmatpush2.msra.mxu0 0.0
        %1262 = vmatprep.subr.mxu0 0.0
        %1263 = vmatpush2.msra.mxu0 0.0
        %1264 = vmatprep.subr.mxu0 0.0
        %1265 = vmatpush2.msra.mxu0 0.0
        %1266 = vmatprep.mubr.f32.mxu0 0.0
        %1267 = vmatmul.mubr.f32.gmra.mxu0 %v1200
        %v1268 = vpop.f32.mrf.mxu0
        %v1269 = vadd.f32 0.0, %v1268
        %v1270 = vpop.f32.mrf.mxu0
        %1271 = vdwg.mxu0
        %1272 = vxpose.xlu0.b32.start [1/16] %v944, 128
        %1273 = vxpose.xlu0.b32.cont [2/16] 0.0, 128
        %1274 = vxpose.xlu0.b32.cont [3/16] 0.0, 128
        %1275 = vxpose.xlu0.b32.cont [4/16] 0.0, 128
        %1276 = vxpose.xlu0.b32.cont [5/16] 0.0, 128
        %1277 = vxpose.xlu0.b32.cont [6/16] 0.0, 128
        %1278 = vxpose.xlu0.b32.cont [7/16] 0.0, 128
        %1279 = vxpose.xlu0.b32.cont [8/16] 0.0, 128
        %1280 = vxpose.xlu0.b32.cont [9/16] 0.0, 128
        %1281 = vxpose.xlu0.b32.cont [10/16] 0.0, 128
        %1282 = vxpose.xlu0.b32.cont [11/16] 0.0, 128
        %1283 = vxpose.xlu0.b32.cont [12/16] 0.0, 128
        %1284 = vxpose.xlu0.b32.cont [13/16] 0.0, 128
        %1285 = vxpose.xlu0.b32.cont [14/16] 0.0, 128
        %1286 = vxpose.xlu0.b32.cont [15/16] 0.0, 128
        %1287 = vxpose.xlu0.b32.end [16/16] 0.0, 128
        %v1288 = vpop.trf.xlu0
        %v1289 = vpop.trf.xlu0
        %v1290 = vpop.trf.xlu0
        %v1291 = vpop.trf.xlu0
        %v1292 = vpop.trf.xlu0
        %v1293 = vpop.trf.xlu0
        %v1294 = vpop.trf.xlu0
        %v1295 = vpop.trf.xlu0
        %v1296 = vpop.trf.xlu0
        %v1297 = vpop.trf.xlu0
        %v1298 = vpop.trf.xlu0
        %v1299 = vpop.trf.xlu0
        %v1300 = vpop.trf.xlu0
        %v1301 = vpop.trf.xlu0
        %v1302 = vpop.trf.xlu0
        %v1303 = vpop.trf.xlu0
        %v1305 = vsel %vm652, %v1288, 0
        %1307 = vmatprep.subr.mxu0 0.0
        %1308 = vmatpush1.msra.mxu0 0.0
        %1309 = vmatprep.subr.mxu0 0.0
        %1310 = vmatpush1.msra.mxu0 0.0
        %1311 = vmatprep.subr.mxu0 0.0
        %1312 = vmatpush1.msra.mxu0 0.0
        %1313 = vmatprep.subr.mxu0 0.0
        %1314 = vmatpush1.msra.mxu0 0.0
        %1315 = vmatprep.subr.mxu0 0.0
        %1316 = vmatpush1.msra.mxu0 0.0
        %1317 = vmatprep.subr.mxu0 0.0
        %1318 = vmatpush1.msra.mxu0 0.0
        %1319 = vmatprep.subr.mxu0 0.0
        %1320 = vmatpush1.msra.mxu0 0.0
        %1321 = vmatprep.subr.mxu0 0.0
        %1322 = vmatpush1.msra.mxu0 0.0
        %1323 = vmatprep.subr.mxu0 0.0
        %1324 = vmatpush1.msra.mxu0 0.0
        %1325 = vmatprep.subr.mxu0 0.0
        %1326 = vmatpush1.msra.mxu0 0.0
        %1327 = vmatprep.subr.mxu0 0.0
        %1328 = vmatpush1.msra.mxu0 0.0
        %1329 = vmatprep.subr.mxu0 0.0
        %1330 = vmatpush1.msra.mxu0 0.0
        %1331 = vmatprep.subr.mxu0 0.0
        %1332 = vmatpush1.msra.mxu0 0.0
        %1333 = vmatprep.subr.mxu0 0.0
        %1334 = vmatpush1.msra.mxu0 0.0
        %1335 = vmatprep.subr.mxu0 0.0
        %1336 = vmatpush1.msra.mxu0 0.0
        %1337 = vmatprep.subr.mxu0 0.0
        %1338 = vmatpush1.msra.mxu0 %v221
        %1339 = vmatprep.subr.mxu0 0.0
        %1340 = vmatpush2.msra.mxu0 0.0
        %1341 = vmatprep.subr.mxu0 0.0
        %1342 = vmatpush2.msra.mxu0 0.0
        %1343 = vmatprep.subr.mxu0 0.0
        %1344 = vmatpush2.msra.mxu0 0.0
        %1345 = vmatprep.subr.mxu0 0.0
        %1346 = vmatpush2.msra.mxu0 0.0
        %1347 = vmatprep.subr.mxu0 0.0
        %1348 = vmatpush2.msra.mxu0 0.0
        %1349 = vmatprep.subr.mxu0 0.0
        %1350 = vmatpush2.msra.mxu0 0.0
        %1351 = vmatprep.subr.mxu0 0.0
        %1352 = vmatpush2.msra.mxu0 0.0
        %1353 = vmatprep.subr.mxu0 0.0
        %1354 = vmatpush2.msra.mxu0 0.0
        %1355 = vmatprep.subr.mxu0 0.0
        %1356 = vmatpush2.msra.mxu0 0.0
        %1357 = vmatprep.subr.mxu0 0.0
        %1358 = vmatpush2.msra.mxu0 0.0
        %1359 = vmatprep.subr.mxu0 0.0
        %1360 = vmatpush2.msra.mxu0 0.0
        %1361 = vmatprep.subr.mxu0 0.0
        %1362 = vmatpush2.msra.mxu0 0.0
        %1363 = vmatprep.subr.mxu0 0.0
        %1364 = vmatpush2.msra.mxu0 0.0
        %1365 = vmatprep.subr.mxu0 0.0
        %1366 = vmatpush2.msra.mxu0 0.0
        %1367 = vmatprep.subr.mxu0 0.0
        %1368 = vmatpush2.msra.mxu0 0.0
        %1369 = vmatprep.subr.mxu0 0.0
        %1370 = vmatpush2.msra.mxu0 0.0
        %1371 = vmatprep.mubr.f32.mxu0 0.0
        %1372 = vmatmul.mubr.f32.gmra.mxu0 %v1305
        %v1373 = vpop.f32.mrf.mxu0
        %v1374 = vadd.f32 0.0, %v1373
        %v1375 = vpop.f32.mrf.mxu0
        %1376 = vdwg.mxu0
        %1377 = vxpose.xlu0.b32.start [1/16] %v945, 128
        %1378 = vxpose.xlu0.b32.cont [2/16] 0.0, 128
        %1379 = vxpose.xlu0.b32.cont [3/16] 0.0, 128
        %1380 = vxpose.xlu0.b32.cont [4/16] 0.0, 128
        %1381 = vxpose.xlu0.b32.cont [5/16] 0.0, 128
        %1382 = vxpose.xlu0.b32.cont [6/16] 0.0, 128
        %1383 = vxpose.xlu0.b32.cont [7/16] 0.0, 128
        %1384 = vxpose.xlu0.b32.cont [8/16] 0.0, 128
        %1385 = vxpose.xlu0.b32.cont [9/16] 0.0, 128
        %1386 = vxpose.xlu0.b32.cont [10/16] 0.0, 128
        %1387 = vxpose.xlu0.b32.cont [11/16] 0.0, 128
        %1388 = vxpose.xlu0.b32.cont [12/16] 0.0, 128
        %1389 = vxpose.xlu0.b32.cont [13/16] 0.0, 128
        %1390 = vxpose.xlu0.b32.cont [14/16] 0.0, 128
        %1391 = vxpose.xlu0.b32.cont [15/16] 0.0, 128
        %1392 = vxpose.xlu0.b32.end [16/16] 0.0, 128
        %v1393 = vpop.trf.xlu0
        %v1394 = vpop.trf.xlu0
        %v1395 = vpop.trf.xlu0
        %v1396 = vpop.trf.xlu0
        %v1397 = vpop.trf.xlu0
        %v1398 = vpop.trf.xlu0
        %v1399 = vpop.trf.xlu0
        %v1400 = vpop.trf.xlu0
        %v1401 = vpop.trf.xlu0
        %v1402 = vpop.trf.xlu0
        %v1403 = vpop.trf.xlu0
        %v1404 = vpop.trf.xlu0
        %v1405 = vpop.trf.xlu0
        %v1406 = vpop.trf.xlu0
        %v1407 = vpop.trf.xlu0
        %v1408 = vpop.trf.xlu0
        %v1410 = vsel %vm652, %v1393, 0
        %1412 = vmatprep.subr.mxu0 0.0
        %1413 = vmatpush1.msra.mxu0 0.0
        %1414 = vmatprep.subr.mxu0 0.0
        %1415 = vmatpush1.msra.mxu0 0.0
        %1416 = vmatprep.subr.mxu0 0.0
        %1417 = vmatpush1.msra.mxu0 0.0
        %1418 = vmatprep.subr.mxu0 0.0
        %1419 = vmatpush1.msra.mxu0 0.0
        %1420 = vmatprep.subr.mxu0 0.0
        %1421 = vmatpush1.msra.mxu0 0.0
        %1422 = vmatprep.subr.mxu0 0.0
        %1423 = vmatpush1.msra.mxu0 0.0
        %1424 = vmatprep.subr.mxu0 0.0
        %1425 = vmatpush1.msra.mxu0 0.0
        %1426 = vmatprep.subr.mxu0 0.0
        %1427 = vmatpush1.msra.mxu0 0.0
        %1428 = vmatprep.subr.mxu0 0.0
        %1429 = vmatpush1.msra.mxu0 0.0
        %1430 = vmatprep.subr.mxu0 0.0
        %1431 = vmatpush1.msra.mxu0 0.0
        %1432 = vmatprep.subr.mxu0 0.0
        %1433 = vmatpush1.msra.mxu0 0.0
        %1434 = vmatprep.subr.mxu0 0.0
        %1435 = vmatpush1.msra.mxu0 0.0
        %1436 = vmatprep.subr.mxu0 0.0
        %1437 = vmatpush1.msra.mxu0 0.0
        %1438 = vmatprep.subr.mxu0 0.0
        %1439 = vmatpush1.msra.mxu0 0.0
        %1440 = vmatprep.subr.mxu0 0.0
        %1441 = vmatpush1.msra.mxu0 0.0
        %1442 = vmatprep.subr.mxu0 0.0
        %1443 = vmatpush1.msra.mxu0 %v222
        %1444 = vmatprep.subr.mxu0 0.0
        %1445 = vmatpush2.msra.mxu0 0.0
        %1446 = vmatprep.subr.mxu0 0.0
        %1447 = vmatpush2.msra.mxu0 0.0
        %1448 = vmatprep.subr.mxu0 0.0
        %1449 = vmatpush2.msra.mxu0 0.0
        %1450 = vmatprep.subr.mxu0 0.0
        %1451 = vmatpush2.msra.mxu0 0.0
        %1452 = vmatprep.subr.mxu0 0.0
        %1453 = vmatpush2.msra.mxu0 0.0
        %1454 = vmatprep.subr.mxu0 0.0
        %1455 = vmatpush2.msra.mxu0 0.0
        %1456 = vmatprep.subr.mxu0 0.0
        %1457 = vmatpush2.msra.mxu0 0.0
        %1458 = vmatprep.subr.mxu0 0.0
        %1459 = vmatpush2.msra.mxu0 0.0
        %1460 = vmatprep.subr.mxu0 0.0
        %1461 = vmatpush2.msra.mxu0 0.0
        %1462 = vmatprep.subr.mxu0 0.0
        %1463 = vmatpush2.msra.mxu0 0.0
        %1464 = vmatprep.subr.mxu0 0.0
        %1465 = vmatpush2.msra.mxu0 0.0
        %1466 = vmatprep.subr.mxu0 0.0
        %1467 = vmatpush2.msra.mxu0 0.0
        %1468 = vmatprep.subr.mxu0 0.0
        %1469 = vmatpush2.msra.mxu0 0.0
        %1470 = vmatprep.subr.mxu0 0.0
        %1471 = vmatpush2.msra.mxu0 0.0
        %1472 = vmatprep.subr.mxu0 0.0
        %1473 = vmatpush2.msra.mxu0 0.0
        %1474 = vmatprep.subr.mxu0 0.0
        %1475 = vmatpush2.msra.mxu0 0.0
        %1476 = vmatprep.mubr.f32.mxu0 0.0
        %1477 = vmatmul.mubr.f32.gmra.mxu0 %v1410
        %v1478 = vpop.f32.mrf.mxu0
        %v1479 = vadd.f32 0.0, %v1478
        %v1480 = vpop.f32.mrf.mxu0
        %1481 = vdwg.mxu0
        %1482 = vxpose.xlu0.b32.start [1/16] %v946, 128
        %1483 = vxpose.xlu0.b32.cont [2/16] 0.0, 128
        %1484 = vxpose.xlu0.b32.cont [3/16] 0.0, 128
        %1485 = vxpose.xlu0.b32.cont [4/16] 0.0, 128
        %1486 = vxpose.xlu0.b32.cont [5/16] 0.0, 128
        %1487 = vxpose.xlu0.b32.cont [6/16] 0.0, 128
        %1488 = vxpose.xlu0.b32.cont [7/16] 0.0, 128
        %1489 = vxpose.xlu0.b32.cont [8/16] 0.0, 128
        %1490 = vxpose.xlu0.b32.cont [9/16] 0.0, 128
        %1491 = vxpose.xlu0.b32.cont [10/16] 0.0, 128
        %1492 = vxpose.xlu0.b32.cont [11/16] 0.0, 128
        %1493 = vxpose.xlu0.b32.cont [12/16] 0.0, 128
        %1494 = vxpose.xlu0.b32.cont [13/16] 0.0, 128
        %1495 = vxpose.xlu0.b32.cont [14/16] 0.0, 128
        %1496 = vxpose.xlu0.b32.cont [15/16] 0.0, 128
        %1497 = vxpose.xlu0.b32.end [16/16] 0.0, 128
        %v1498 = vpop.trf.xlu0
        %v1499 = vpop.trf.xlu0
        %v1500 = vpop.trf.xlu0
        %v1501 = vpop.trf.xlu0
        %v1502 = vpop.trf.xlu0
        %v1503 = vpop.trf.xlu0
        %v1504 = vpop.trf.xlu0
        %v1505 = vpop.trf.xlu0
        %v1506 = vpop.trf.xlu0
        %v1507 = vpop.trf.xlu0
        %v1508 = vpop.trf.xlu0
        %v1509 = vpop.trf.xlu0
        %v1510 = vpop.trf.xlu0
        %v1511 = vpop.trf.xlu0
        %v1512 = vpop.trf.xlu0
        %v1513 = vpop.trf.xlu0
        %v1515 = vsel %vm652, %v1498, 0
        %1517 = vmatprep.subr.mxu0 0.0
        %1518 = vmatpush1.msra.mxu0 0.0
        %1519 = vmatprep.subr.mxu0 0.0
        %1520 = vmatpush1.msra.mxu0 0.0
        %1521 = vmatprep.subr.mxu0 0.0
        %1522 = vmatpush1.msra.mxu0 0.0
        %1523 = vmatprep.subr.mxu0 0.0
        %1524 = vmatpush1.msra.mxu0 0.0
        %1525 = vmatprep.subr.mxu0 0.0
        %1526 = vmatpush1.msra.mxu0 0.0
        %1527 = vmatprep.subr.mxu0 0.0
        %1528 = vmatpush1.msra.mxu0 0.0
        %1529 = vmatprep.subr.mxu0 0.0
        %1530 = vmatpush1.msra.mxu0 0.0
        %1531 = vmatprep.subr.mxu0 0.0
        %1532 = vmatpush1.msra.mxu0 0.0
        %1533 = vmatprep.subr.mxu0 0.0
        %1534 = vmatpush1.msra.mxu0 0.0
        %1535 = vmatprep.subr.mxu0 0.0
        %1536 = vmatpush1.msra.mxu0 0.0
        %1537 = vmatprep.subr.mxu0 0.0
        %1538 = vmatpush1.msra.mxu0 0.0
        %1539 = vmatprep.subr.mxu0 0.0
        %1540 = vmatpush1.msra.mxu0 0.0
        %1541 = vmatprep.subr.mxu0 0.0
        %1542 = vmatpush1.msra.mxu0 0.0
        %1543 = vmatprep.subr.mxu0 0.0
        %1544 = vmatpush1.msra.mxu0 0.0
        %1545 = vmatprep.subr.mxu0 0.0
        %1546 = vmatpush1.msra.mxu0 0.0
        %1547 = vmatprep.subr.mxu0 0.0
        %1548 = vmatpush1.msra.mxu0 %v223
        %1549 = vmatprep.subr.mxu0 0.0
        %1550 = vmatpush2.msra.mxu0 0.0
        %1551 = vmatprep.subr.mxu0 0.0
        %1552 = vmatpush2.msra.mxu0 0.0
        %1553 = vmatprep.subr.mxu0 0.0
        %1554 = vmatpush2.msra.mxu0 0.0
        %1555 = vmatprep.subr.mxu0 0.0
        %1556 = vmatpush2.msra.mxu0 0.0
        %1557 = vmatprep.subr.mxu0 0.0
        %1558 = vmatpush2.msra.mxu0 0.0
        %1559 = vmatprep.subr.mxu0 0.0
        %1560 = vmatpush2.msra.mxu0 0.0
        %1561 = vmatprep.subr.mxu0 0.0
        %1562 = vmatpush2.msra.mxu0 0.0
        %1563 = vmatprep.subr.mxu0 0.0
        %1564 = vmatpush2.msra.mxu0 0.0
        %1565 = vmatprep.subr.mxu0 0.0
        %1566 = vmatpush2.msra.mxu0 0.0
        %1567 = vmatprep.subr.mxu0 0.0
        %1568 = vmatpush2.msra.mxu0 0.0
        %1569 = vmatprep.subr.mxu0 0.0
        %1570 = vmatpush2.msra.mxu0 0.0
        %1571 = vmatprep.subr.mxu0 0.0
        %1572 = vmatpush2.msra.mxu0 0.0
        %1573 = vmatprep.subr.mxu0 0.0
        %1574 = vmatpush2.msra.mxu0 0.0
        %1575 = vmatprep.subr.mxu0 0.0
        %1576 = vmatpush2.msra.mxu0 0.0
        %1577 = vmatprep.subr.mxu0 0.0
        %1578 = vmatpush2.msra.mxu0 0.0
        %1579 = vmatprep.subr.mxu0 0.0
        %1580 = vmatpush2.msra.mxu0 0.0
        %1581 = vmatprep.mubr.f32.mxu0 0.0
        %1582 = vmatmul.mubr.f32.gmra.mxu0 %v1515
        %v1583 = vpop.f32.mrf.mxu0
        %v1584 = vadd.f32 0.0, %v1583
        %v1585 = vpop.f32.mrf.mxu0
        %1586 = vdwg.mxu0
        %1587 = vxpose.xlu0.b32.start [1/16] %v947, 128
        %1588 = vxpose.xlu0.b32.cont [2/16] 0.0, 128
        %1589 = vxpose.xlu0.b32.cont [3/16] 0.0, 128
        %1590 = vxpose.xlu0.b32.cont [4/16] 0.0, 128
        %1591 = vxpose.xlu0.b32.cont [5/16] 0.0, 128
        %1592 = vxpose.xlu0.b32.cont [6/16] 0.0, 128
        %1593 = vxpose.xlu0.b32.cont [7/16] 0.0, 128
        %1594 = vxpose.xlu0.b32.cont [8/16] 0.0, 128
        %1595 = vxpose.xlu0.b32.cont [9/16] 0.0, 128
        %1596 = vxpose.xlu0.b32.cont [10/16] 0.0, 128
        %1597 = vxpose.xlu0.b32.cont [11/16] 0.0, 128
        %1598 = vxpose.xlu0.b32.cont [12/16] 0.0, 128
        %1599 = vxpose.xlu0.b32.cont [13/16] 0.0, 128
        %1600 = vxpose.xlu0.b32.cont [14/16] 0.0, 128
        %1601 = vxpose.xlu0.b32.cont [15/16] 0.0, 128
        %1602 = vxpose.xlu0.b32.end [16/16] 0.0, 128
        %v1603 = vpop.trf.xlu0
        %v1604 = vpop.trf.xlu0
        %v1605 = vpop.trf.xlu0
        %v1606 = vpop.trf.xlu0
        %v1607 = vpop.trf.xlu0
        %v1608 = vpop.trf.xlu0
        %v1609 = vpop.trf.xlu0
        %v1610 = vpop.trf.xlu0
        %v1611 = vpop.trf.xlu0
        %v1612 = vpop.trf.xlu0
        %v1613 = vpop.trf.xlu0
        %v1614 = vpop.trf.xlu0
        %v1615 = vpop.trf.xlu0
        %v1616 = vpop.trf.xlu0
        %v1617 = vpop.trf.xlu0
        %v1618 = vpop.trf.xlu0
        %v1620 = vsel %vm652, %v1603, 0
        %1622 = vmatprep.subr.mxu0 0.0
        %1623 = vmatpush1.msra.mxu0 0.0
        %1624 = vmatprep.subr.mxu0 0.0
        %1625 = vmatpush1.msra.mxu0 0.0
        %1626 = vmatprep.subr.mxu0 0.0
        %1627 = vmatpush1.msra.mxu0 0.0
        %1628 = vmatprep.subr.mxu0 0.0
        %1629 = vmatpush1.msra.mxu0 0.0
        %1630 = vmatprep.subr.mxu0 0.0
        %1631 = vmatpush1.msra.mxu0 0.0
        %1632 = vmatprep.subr.mxu0 0.0
        %1633 = vmatpush1.msra.mxu0 0.0
        %1634 = vmatprep.subr.mxu0 0.0
        %1635 = vmatpush1.msra.mxu0 0.0
        %1636 = vmatprep.subr.mxu0 0.0
        %1637 = vmatpush1.msra.mxu0 0.0
        %1638 = vmatprep.subr.mxu0 0.0
        %1639 = vmatpush1.msra.mxu0 0.0
        %1640 = vmatprep.subr.mxu0 0.0
        %1641 = vmatpush1.msra.mxu0 0.0
        %1642 = vmatprep.subr.mxu0 0.0
        %1643 = vmatpush1.msra.mxu0 0.0
        %1644 = vmatprep.subr.mxu0 0.0
        %1645 = vmatpush1.msra.mxu0 0.0
        %1646 = vmatprep.subr.mxu0 0.0
        %1647 = vmatpush1.msra.mxu0 0.0
        %1648 = vmatprep.subr.mxu0 0.0
        %1649 = vmatpush1.msra.mxu0 0.0
        %1650 = vmatprep.subr.mxu0 0.0
        %1651 = vmatpush1.msra.mxu0 0.0
        %1652 = vmatprep.subr.mxu0 0.0
        %1653 = vmatpush1.msra.mxu0 %v224
        %1654 = vmatprep.subr.mxu0 0.0
        %1655 = vmatpush2.msra.mxu0 0.0
        %1656 = vmatprep.subr.mxu0 0.0
        %1657 = vmatpush2.msra.mxu0 0.0
        %1658 = vmatprep.subr.mxu0 0.0
        %1659 = vmatpush2.msra.mxu0 0.0
        %1660 = vmatprep.subr.mxu0 0.0
        %1661 = vmatpush2.msra.mxu0 0.0
        %1662 = vmatprep.subr.mxu0 0.0
        %1663 = vmatpush2.msra.mxu0 0.0
        %1664 = vmatprep.subr.mxu0 0.0
        %1665 = vmatpush2.msra.mxu0 0.0
        %1666 = vmatprep.subr.mxu0 0.0
        %1667 = vmatpush2.msra.mxu0 0.0
        %1668 = vmatprep.subr.mxu0 0.0
        %1669 = vmatpush2.msra.mxu0 0.0
        %1670 = vmatprep.subr.mxu0 0.0
        %1671 = vmatpush2.msra.mxu0 0.0
        %1672 = vmatprep.subr.mxu0 0.0
        %1673 = vmatpush2.msra.mxu0 0.0
        %1674 = vmatprep.subr.mxu0 0.0
        %1675 = vmatpush2.msra.mxu0 0.0
        %1676 = vmatprep.subr.mxu0 0.0
        %1677 = vmatpush2.msra.mxu0 0.0
        %1678 = vmatprep.subr.mxu0 0.0
        %1679 = vmatpush2.msra.mxu0 0.0
        %1680 = vmatprep.subr.mxu0 0.0
        %1681 = vmatpush2.msra.mxu0 0.0
        %1682 = vmatprep.subr.mxu0 0.0
        %1683 = vmatpush2.msra.mxu0 0.0
        %1684 = vmatprep.subr.mxu0 0.0
        %1685 = vmatpush2.msra.mxu0 0.0
        %1686 = vmatprep.mubr.f32.mxu0 0.0
        %1687 = vmatmul.mubr.f32.gmra.mxu0 %v1620
        %v1688 = vpop.f32.mrf.mxu0
        %v1689 = vadd.f32 0.0, %v1688
        %v1690 = vpop.f32.mrf.mxu0
        %1691 = vdwg.mxu0
        %1692 = vxpose.xlu0.b32.start [1/16] %v948, 128
        %1693 = vxpose.xlu0.b32.cont [2/16] 0.0, 128
        %1694 = vxpose.xlu0.b32.cont [3/16] 0.0, 128
        %1695 = vxpose.xlu0.b32.cont [4/16] 0.0, 128
        %1696 = vxpose.xlu0.b32.cont [5/16] 0.0, 128
        %1697 = vxpose.xlu0.b32.cont [6/16] 0.0, 128
        %1698 = vxpose.xlu0.b32.cont [7/16] 0.0, 128
        %1699 = vxpose.xlu0.b32.cont [8/16] 0.0, 128
        %1700 = vxpose.xlu0.b32.cont [9/16] 0.0, 128
        %1701 = vxpose.xlu0.b32.cont [10/16] 0.0, 128
        %1702 = vxpose.xlu0.b32.cont [11/16] 0.0, 128
        %1703 = vxpose.xlu0.b32.cont [12/16] 0.0, 128
        %1704 = vxpose.xlu0.b32.cont [13/16] 0.0, 128
        %1705 = vxpose.xlu0.b32.cont [14/16] 0.0, 128
        %1706 = vxpose.xlu0.b32.cont [15/16] 0.0, 128
        %1707 = vxpose.xlu0.b32.end [16/16] 0.0, 128
        %v1708 = vpop.trf.xlu0
        %v1709 = vpop.trf.xlu0
        %v1710 = vpop.trf.xlu0
        %v1711 = vpop.trf.xlu0
        %v1712 = vpop.trf.xlu0
        %v1713 = vpop.trf.xlu0
        %v1714 = vpop.trf.xlu0
        %v1715 = vpop.trf.xlu0
        %v1716 = vpop.trf.xlu0
        %v1717 = vpop.trf.xlu0
        %v1718 = vpop.trf.xlu0
        %v1719 = vpop.trf.xlu0
        %v1720 = vpop.trf.xlu0
        %v1721 = vpop.trf.xlu0
        %v1722 = vpop.trf.xlu0
        %v1723 = vpop.trf.xlu0
        %v1725 = vsel %vm652, %v1708, 0
        %1727 = vmatprep.subr.mxu0 0.0
        %1728 = vmatpush1.msra.mxu0 0.0
        %1729 = vmatprep.subr.mxu0 0.0
        %1730 = vmatpush1.msra.mxu0 0.0
        %1731 = vmatprep.subr.mxu0 0.0
        %1732 = vmatpush1.msra.mxu0 0.0
        %1733 = vmatprep.subr.mxu0 0.0
        %1734 = vmatpush1.msra.mxu0 0.0
        %1735 = vmatprep.subr.mxu0 0.0
        %1736 = vmatpush1.msra.mxu0 0.0
        %1737 = vmatprep.subr.mxu0 0.0
        %1738 = vmatpush1.msra.mxu0 0.0
        %1739 = vmatprep.subr.mxu0 0.0
        %1740 = vmatpush1.msra.mxu0 0.0
        %1741 = vmatprep.subr.mxu0 0.0
        %1742 = vmatpush1.msra.mxu0 0.0
        %1743 = vmatprep.subr.mxu0 0.0
        %1744 = vmatpush1.msra.mxu0 0.0
        %1745 = vmatprep.subr.mxu0 0.0
        %1746 = vmatpush1.msra.mxu0 0.0
        %1747 = vmatprep.subr.mxu0 0.0
        %1748 = vmatpush1.msra.mxu0 0.0
        %1749 = vmatprep.subr.mxu0 0.0
        %1750 = vmatpush1.msra.mxu0 0.0
        %1751 = vmatprep.subr.mxu0 0.0
        %1752 = vmatpush1.msra.mxu0 0.0
        %1753 = vmatprep.subr.mxu0 0.0
        %1754 = vmatpush1.msra.mxu0 0.0
        %1755 = vmatprep.subr.mxu0 0.0
        %1756 = vmatpush1.msra.mxu0 0.0
        %1757 = vmatprep.subr.mxu0 0.0
        %1758 = vmatpush1.msra.mxu0 %v225
        %1759 = vmatprep.subr.mxu0 0.0
        %1760 = vmatpush2.msra.mxu0 0.0
        %1761 = vmatprep.subr.mxu0 0.0
        %1762 = vmatpush2.msra.mxu0 0.0
        %1763 = vmatprep.subr.mxu0 0.0
        %1764 = vmatpush2.msra.mxu0 0.0
        %1765 = vmatprep.subr.mxu0 0.0
        %1766 = vmatpush2.msra.mxu0 0.0
        %1767 = vmatprep.subr.mxu0 0.0
        %1768 = vmatpush2.msra.mxu0 0.0
        %1769 = vmatprep.subr.mxu0 0.0
        %1770 = vmatpush2.msra.mxu0 0.0
        %1771 = vmatprep.subr.mxu0 0.0
        %1772 = vmatpush2.msra.mxu0 0.0
        %1773 = vmatprep.subr.mxu0 0.0
        %1774 = vmatpush2.msra.mxu0 0.0
        %1775 = vmatprep.subr.mxu0 0.0
        %1776 = vmatpush2.msra.mxu0 0.0
        %1777 = vmatprep.subr.mxu0 0.0
        %1778 = vmatpush2.msra.mxu0 0.0
        %1779 = vmatprep.subr.mxu0 0.0
        %1780 = vmatpush2.msra.mxu0 0.0
        %1781 = vmatprep.subr.mxu0 0.0
        %1782 = vmatpush2.msra.mxu0 0.0
        %1783 = vmatprep.subr.mxu0 0.0
        %1784 = vmatpush2.msra.mxu0 0.0
        %1785 = vmatprep.subr.mxu0 0.0
        %1786 = vmatpush2.msra.mxu0 0.0
        %1787 = vmatprep.subr.mxu0 0.0
        %1788 = vmatpush2.msra.mxu0 0.0
        %1789 = vmatprep.subr.mxu0 0.0
        %1790 = vmatpush2.msra.mxu0 0.0
        %1791 = vmatprep.mubr.f32.mxu0 0.0
        %1792 = vmatmul.mubr.f32.gmra.mxu0 %v1725
        %v1793 = vpop.f32.mrf.mxu0
        %v1794 = vadd.f32 0.0, %v1793
        %v1795 = vpop.f32.mrf.mxu0
        %1796 = vdwg.mxu0
        %1797 = vxpose.xlu0.b32.start [1/16] %v949, 128
        %1798 = vxpose.xlu0.b32.cont [2/16] 0.0, 128
        %1799 = vxpose.xlu0.b32.cont [3/16] 0.0, 128
        %1800 = vxpose.xlu0.b32.cont [4/16] 0.0, 128
        %1801 = vxpose.xlu0.b32.cont [5/16] 0.0, 128
        %1802 = vxpose.xlu0.b32.cont [6/16] 0.0, 128
        %1803 = vxpose.xlu0.b32.cont [7/16] 0.0, 128
        %1804 = vxpose.xlu0.b32.cont [8/16] 0.0, 128
        %1805 = vxpose.xlu0.b32.cont [9/16] 0.0, 128
        %1806 = vxpose.xlu0.b32.cont [10/16] 0.0, 128
        %1807 = vxpose.xlu0.b32.cont [11/16] 0.0, 128
        %1808 = vxpose.xlu0.b32.cont [12/16] 0.0, 128
        %1809 = vxpose.xlu0.b32.cont [13/16] 0.0, 128
        %1810 = vxpose.xlu0.b32.cont [14/16] 0.0, 128
        %1811 = vxpose.xlu0.b32.cont [15/16] 0.0, 128
        %1812 = vxpose.xlu0.b32.end [16/16] 0.0, 128
        %v1813 = vpop.trf.xlu0
        %v1814 = vpop.trf.xlu0
        %v1815 = vpop.trf.xlu0
        %v1816 = vpop.trf.xlu0
        %v1817 = vpop.trf.xlu0
        %v1818 = vpop.trf.xlu0
        %v1819 = vpop.trf.xlu0
        %v1820 = vpop.trf.xlu0
        %v1821 = vpop.trf.xlu0
        %v1822 = vpop.trf.xlu0
        %v1823 = vpop.trf.xlu0
        %v1824 = vpop.trf.xlu0
        %v1825 = vpop.trf.xlu0
        %v1826 = vpop.trf.xlu0
        %v1827 = vpop.trf.xlu0
        %v1828 = vpop.trf.xlu0
        %v1830 = vsel %vm652, %v1813, 0
        %1832 = vmatprep.subr.mxu0 0.0
        %1833 = vmatpush1.msra.mxu0 0.0
        %1834 = vmatprep.subr.mxu0 0.0
        %1835 = vmatpush1.msra.mxu0 0.0
        %1836 = vmatprep.subr.mxu0 0.0
        %1837 = vmatpush1.msra.mxu0 0.0
        %1838 = vmatprep.subr.mxu0 0.0
        %1839 = vmatpush1.msra.mxu0 0.0
        %1840 = vmatprep.subr.mxu0 0.0
        %1841 = vmatpush1.msra.mxu0 0.0
        %1842 = vmatprep.subr.mxu0 0.0
        %1843 = vmatpush1.msra.mxu0 0.0
        %1844 = vmatprep.subr.mxu0 0.0
        %1845 = vmatpush1.msra.mxu0 0.0
        %1846 = vmatprep.subr.mxu0 0.0
        %1847 = vmatpush1.msra.mxu0 0.0
        %1848 = vmatprep.subr.mxu0 0.0
        %1849 = vmatpush1.msra.mxu0 0.0
        %1850 = vmatprep.subr.mxu0 0.0
        %1851 = vmatpush1.msra.mxu0 0.0
        %1852 = vmatprep.subr.mxu0 0.0
        %1853 = vmatpush1.msra.mxu0 0.0
        %1854 = vmatprep.subr.mxu0 0.0
        %1855 = vmatpush1.msra.mxu0 0.0
        %1856 = vmatprep.subr.mxu0 0.0
        %1857 = vmatpush1.msra.mxu0 0.0
        %1858 = vmatprep.subr.mxu0 0.0
        %1859 = vmatpush1.msra.mxu0 0.0
        %1860 = vmatprep.subr.mxu0 0.0
        %1861 = vmatpush1.msra.mxu0 0.0
        %1862 = vmatprep.subr.mxu0 0.0
        %1863 = vmatpush1.msra.mxu0 %v226
        %1864 = vmatprep.subr.mxu0 0.0
        %1865 = vmatpush2.msra.mxu0 0.0
        %1866 = vmatprep.subr.mxu0 0.0
        %1867 = vmatpush2.msra.mxu0 0.0
        %1868 = vmatprep.subr.mxu0 0.0
        %1869 = vmatpush2.msra.mxu0 0.0
        %1870 = vmatprep.subr.mxu0 0.0
        %1871 = vmatpush2.msra.mxu0 0.0
        %1872 = vmatprep.subr.mxu0 0.0
        %1873 = vmatpush2.msra.mxu0 0.0
        %1874 = vmatprep.subr.mxu0 0.0
        %1875 = vmatpush2.msra.mxu0 0.0
        %1876 = vmatprep.subr.mxu0 0.0
        %1877 = vmatpush2.msra.mxu0 0.0
        %1878 = vmatprep.subr.mxu0 0.0
        %1879 = vmatpush2.msra.mxu0 0.0
        %1880 = vmatprep.subr.mxu0 0.0
        %1881 = vmatpush2.msra.mxu0 0.0
        %1882 = vmatprep.subr.mxu0 0.0
        %1883 = vmatpush2.msra.mxu0 0.0
        %1884 = vmatprep.subr.mxu0 0.0
        %1885 = vmatpush2.msra.mxu0 0.0
        %1886 = vmatprep.subr.mxu0 0.0
        %1887 = vmatpush2.msra.mxu0 0.0
        %1888 = vmatprep.subr.mxu0 0.0
        %1889 = vmatpush2.msra.mxu0 0.0
        %1890 = vmatprep.subr.mxu0 0.0
        %1891 = vmatpush2.msra.mxu0 0.0
        %1892 = vmatprep.subr.mxu0 0.0
        %1893 = vmatpush2.msra.mxu0 0.0
        %1894 = vmatprep.subr.mxu0 0.0
        %1895 = vmatpush2.msra.mxu0 0.0
        %1896 = vmatprep.mubr.f32.mxu0 0.0
        %1897 = vmatmul.mubr.f32.gmra.mxu0 %v1830
        %v1898 = vpop.f32.mrf.mxu0
        %v1899 = vadd.f32 0.0, %v1898
        %v1900 = vpop.f32.mrf.mxu0
        %1901 = vdwg.mxu0
        %1902 = vxpose.xlu0.b32.start [1/16] %v950, 128
        %1903 = vxpose.xlu0.b32.cont [2/16] 0.0, 128
        %1904 = vxpose.xlu0.b32.cont [3/16] 0.0, 128
        %1905 = vxpose.xlu0.b32.cont [4/16] 0.0, 128
        %1906 = vxpose.xlu0.b32.cont [5/16] 0.0, 128
        %1907 = vxpose.xlu0.b32.cont [6/16] 0.0, 128
        %1908 = vxpose.xlu0.b32.cont [7/16] 0.0, 128
        %1909 = vxpose.xlu0.b32.cont [8/16] 0.0, 128
        %1910 = vxpose.xlu0.b32.cont [9/16] 0.0, 128
        %1911 = vxpose.xlu0.b32.cont [10/16] 0.0, 128
        %1912 = vxpose.xlu0.b32.cont [11/16] 0.0, 128
        %1913 = vxpose.xlu0.b32.cont [12/16] 0.0, 128
        %1914 = vxpose.xlu0.b32.cont [13/16] 0.0, 128
        %1915 = vxpose.xlu0.b32.cont [14/16] 0.0, 128
        %1916 = vxpose.xlu0.b32.cont [15/16] 0.0, 128
        %1917 = vxpose.xlu0.b32.end [16/16] 0.0, 128
        %v1918 = vpop.trf.xlu0
        %v1919 = vpop.trf.xlu0
        %v1920 = vpop.trf.xlu0
        %v1921 = vpop.trf.xlu0
        %v1922 = vpop.trf.xlu0
        %v1923 = vpop.trf.xlu0
        %v1924 = vpop.trf.xlu0
        %v1925 = vpop.trf.xlu0
        %v1926 = vpop.trf.xlu0
        %v1927 = vpop.trf.xlu0
        %v1928 = vpop.trf.xlu0
        %v1929 = vpop.trf.xlu0
        %v1930 = vpop.trf.xlu0
        %v1931 = vpop.trf.xlu0
        %v1932 = vpop.trf.xlu0
        %v1933 = vpop.trf.xlu0
        %v1935 = vsel %vm652, %v1918, 0
        %1937 = vmatprep.subr.mxu0 0.0
        %1938 = vmatpush1.msra.mxu0 0.0
        %1939 = vmatprep.subr.mxu0 0.0
        %1940 = vmatpush1.msra.mxu0 0.0
        %1941 = vmatprep.subr.mxu0 0.0
        %1942 = vmatpush1.msra.mxu0 0.0
        %1943 = vmatprep.subr.mxu0 0.0
        %1944 = vmatpush1.msra.mxu0 0.0
        %1945 = vmatprep.subr.mxu0 0.0
        %1946 = vmatpush1.msra.mxu0 0.0
        %1947 = vmatprep.subr.mxu0 0.0
        %1948 = vmatpush1.msra.mxu0 0.0
        %1949 = vmatprep.subr.mxu0 0.0
        %1950 = vmatpush1.msra.mxu0 0.0
        %1951 = vmatprep.subr.mxu0 0.0
        %1952 = vmatpush1.msra.mxu0 0.0
        %1953 = vmatprep.subr.mxu0 0.0
        %1954 = vmatpush1.msra.mxu0 0.0
        %1955 = vmatprep.subr.mxu0 0.0
        %1956 = vmatpush1.msra.mxu0 0.0
        %1957 = vmatprep.subr.mxu0 0.0
        %1958 = vmatpush1.msra.mxu0 0.0
        %1959 = vmatprep.subr.mxu0 0.0
        %1960 = vmatpush1.msra.mxu0 0.0
        %1961 = vmatprep.subr.mxu0 0.0
        %1962 = vmatpush1.msra.mxu0 0.0
        %1963 = vmatprep.subr.mxu0 0.0
        %1964 = vmatpush1.msra.mxu0 0.0
        %1965 = vmatprep.subr.mxu0 0.0
        %1966 = vmatpush1.msra.mxu0 0.0
        %1967 = vmatprep.subr.mxu0 0.0
        %1968 = vmatpush1.msra.mxu0 %v227
        %1969 = vmatprep.subr.mxu0 0.0
        %1970 = vmatpush2.msra.mxu0 0.0
        %1971 = vmatprep.subr.mxu0 0.0
        %1972 = vmatpush2.msra.mxu0 0.0
        %1973 = vmatprep.subr.mxu0 0.0
        %1974 = vmatpush2.msra.mxu0 0.0
        %1975 = vmatprep.subr.mxu0 0.0
        %1976 = vmatpush2.msra.mxu0 0.0
        %1977 = vmatprep.subr.mxu0 0.0
        %1978 = vmatpush2.msra.mxu0 0.0
        %1979 = vmatprep.subr.mxu0 0.0
        %1980 = vmatpush2.msra.mxu0 0.0
        %1981 = vmatprep.subr.mxu0 0.0
        %1982 = vmatpush2.msra.mxu0 0.0
        %1983 = vmatprep.subr.mxu0 0.0
        %1984 = vmatpush2.msra.mxu0 0.0
        %1985 = vmatprep.subr.mxu0 0.0
        %1986 = vmatpush2.msra.mxu0 0.0
        %1987 = vmatprep.subr.mxu0 0.0
        %1988 = vmatpush2.msra.mxu0 0.0
        %1989 = vmatprep.subr.mxu0 0.0
        %1990 = vmatpush2.msra.mxu0 0.0
        %1991 = vmatprep.subr.mxu0 0.0
        %1992 = vmatpush2.msra.mxu0 0.0
        %1993 = vmatprep.subr.mxu0 0.0
        %1994 = vmatpush2.msra.mxu0 0.0
        %1995 = vmatprep.subr.mxu0 0.0
        %1996 = vmatpush2.msra.mxu0 0.0
        %1997 = vmatprep.subr.mxu0 0.0
        %1998 = vmatpush2.msra.mxu0 0.0
        %1999 = vmatprep.subr.mxu0 0.0
        %2000 = vmatpush2.msra.mxu0 0.0
        %2001 = vmatprep.mubr.f32.mxu0 0.0
        %2002 = vmatmul.mubr.f32.gmra.mxu0 %v1935
        %v2003 = vpop.f32.mrf.mxu0
        %v2004 = vadd.f32 0.0, %v2003
        %v2005 = vpop.f32.mrf.mxu0
        %2006 = vdwg.mxu0
        %2007 = vxpose.xlu0.b32.start [1/16] %v951, 128
        %2008 = vxpose.xlu0.b32.cont [2/16] 0.0, 128
        %2009 = vxpose.xlu0.b32.cont [3/16] 0.0, 128
        %2010 = vxpose.xlu0.b32.cont [4/16] 0.0, 128
        %2011 = vxpose.xlu0.b32.cont [5/16] 0.0, 128
        %2012 = vxpose.xlu0.b32.cont [6/16] 0.0, 128
        %2013 = vxpose.xlu0.b32.cont [7/16] 0.0, 128
        %2014 = vxpose.xlu0.b32.cont [8/16] 0.0, 128
        %2015 = vxpose.xlu0.b32.cont [9/16] 0.0, 128
        %2016 = vxpose.xlu0.b32.cont [10/16] 0.0, 128
        %2017 = vxpose.xlu0.b32.cont [11/16] 0.0, 128
        %2018 = vxpose.xlu0.b32.cont [12/16] 0.0, 128
        %2019 = vxpose.xlu0.b32.cont [13/16] 0.0, 128
        %2020 = vxpose.xlu0.b32.cont [14/16] 0.0, 128
        %2021 = vxpose.xlu0.b32.cont [15/16] 0.0, 128
        %2022 = vxpose.xlu0.b32.end [16/16] 0.0, 128
        %v2023 = vpop.trf.xlu0
        %v2024 = vpop.trf.xlu0
        %v2025 = vpop.trf.xlu0
        %v2026 = vpop.trf.xlu0
        %v2027 = vpop.trf.xlu0
        %v2028 = vpop.trf.xlu0
        %v2029 = vpop.trf.xlu0
        %v2030 = vpop.trf.xlu0
        %v2031 = vpop.trf.xlu0
        %v2032 = vpop.trf.xlu0
        %v2033 = vpop.trf.xlu0
        %v2034 = vpop.trf.xlu0
        %v2035 = vpop.trf.xlu0
        %v2036 = vpop.trf.xlu0
        %v2037 = vpop.trf.xlu0
        %v2038 = vpop.trf.xlu0
        %v2040 = vsel %vm652, %v2023, 0
        %2042 = vmatprep.subr.mxu0 0.0
        %2043 = vmatpush1.msra.mxu0 0.0
        %2044 = vmatprep.subr.mxu0 0.0
        %2045 = vmatpush1.msra.mxu0 0.0
        %2046 = vmatprep.subr.mxu0 0.0
        %2047 = vmatpush1.msra.mxu0 0.0
        %2048 = vmatprep.subr.mxu0 0.0
        %2049 = vmatpush1.msra.mxu0 0.0
        %2050 = vmatprep.subr.mxu0 0.0
        %2051 = vmatpush1.msra.mxu0 0.0
        %2052 = vmatprep.subr.mxu0 0.0
        %2053 = vmatpush1.msra.mxu0 0.0
        %2054 = vmatprep.subr.mxu0 0.0
        %2055 = vmatpush1.msra.mxu0 0.0
        %2056 = vmatprep.subr.mxu0 0.0
        %2057 = vmatpush1.msra.mxu0 0.0
        %2058 = vmatprep.subr.mxu0 0.0
        %2059 = vmatpush1.msra.mxu0 0.0
        %2060 = vmatprep.subr.mxu0 0.0
        %2061 = vmatpush1.msra.mxu0 0.0
        %2062 = vmatprep.subr.mxu0 0.0
        %2063 = vmatpush1.msra.mxu0 0.0
        %2064 = vmatprep.subr.mxu0 0.0
        %2065 = vmatpush1.msra.mxu0 0.0
        %2066 = vmatprep.subr.mxu0 0.0
        %2067 = vmatpush1.msra.mxu0 0.0
        %2068 = vmatprep.subr.mxu0 0.0
        %2069 = vmatpush1.msra.mxu0 0.0
        %2070 = vmatprep.subr.mxu0 0.0
        %2071 = vmatpush1.msra.mxu0 0.0
        %2072 = vmatprep.subr.mxu0 0.0
        %2073 = vmatpush1.msra.mxu0 %v228
        %2074 = vmatprep.subr.mxu0 0.0
        %2075 = vmatpush2.msra.mxu0 0.0
        %2076 = vmatprep.subr.mxu0 0.0
        %2077 = vmatpush2.msra.mxu0 0.0
        %2078 = vmatprep.subr.mxu0 0.0
        %2079 = vmatpush2.msra.mxu0 0.0
        %2080 = vmatprep.subr.mxu0 0.0
        %2081 = vmatpush2.msra.mxu0 0.0
        %2082 = vmatprep.subr.mxu0 0.0
        %2083 = vmatpush2.msra.mxu0 0.0
        %2084 = vmatprep.subr.mxu0 0.0
        %2085 = vmatpush2.msra.mxu0 0.0
        %2086 = vmatprep.subr.mxu0 0.0
        %2087 = vmatpush2.msra.mxu0 0.0
        %2088 = vmatprep.subr.mxu0 0.0
        %2089 = vmatpush2.msra.mxu0 0.0
        %2090 = vmatprep.subr.mxu0 0.0
        %2091 = vmatpush2.msra.mxu0 0.0
        %2092 = vmatprep.subr.mxu0 0.0
        %2093 = vmatpush2.msra.mxu0 0.0
        %2094 = vmatprep.subr.mxu0 0.0
        %2095 = vmatpush2.msra.mxu0 0.0
        %2096 = vmatprep.subr.mxu0 0.0
        %2097 = vmatpush2.msra.mxu0 0.0
        %2098 = vmatprep.subr.mxu0 0.0
        %2099 = vmatpush2.msra.mxu0 0.0
        %2100 = vmatprep.subr.mxu0 0.0
        %2101 = vmatpush2.msra.mxu0 0.0
        %2102 = vmatprep.subr.mxu0 0.0
        %2103 = vmatpush2.msra.mxu0 0.0
        %2104 = vmatprep.subr.mxu0 0.0
        %2105 = vmatpush2.msra.mxu0 0.0
        %2106 = vmatprep.mubr.f32.mxu0 0.0
        %2107 = vmatmul.mubr.f32.gmra.mxu0 %v2040
        %v2108 = vpop.f32.mrf.mxu0
        %v2109 = vadd.f32 0.0, %v2108
        %v2110 = vpop.f32.mrf.mxu0
        %2111 = vdwg.mxu0
        %2112 = vxpose.xlu0.b32.start [1/16] %v952, 128
        %2113 = vxpose.xlu0.b32.cont [2/16] 0.0, 128
        %2114 = vxpose.xlu0.b32.cont [3/16] 0.0, 128
        %2115 = vxpose.xlu0.b32.cont [4/16] 0.0, 128
        %2116 = vxpose.xlu0.b32.cont [5/16] 0.0, 128
        %2117 = vxpose.xlu0.b32.cont [6/16] 0.0, 128
        %2118 = vxpose.xlu0.b32.cont [7/16] 0.0, 128
        %2119 = vxpose.xlu0.b32.cont [8/16] 0.0, 128
        %2120 = vxpose.xlu0.b32.cont [9/16] 0.0, 128
        %2121 = vxpose.xlu0.b32.cont [10/16] 0.0, 128
        %2122 = vxpose.xlu0.b32.cont [11/16] 0.0, 128
        %2123 = vxpose.xlu0.b32.cont [12/16] 0.0, 128
        %2124 = vxpose.xlu0.b32.cont [13/16] 0.0, 128
        %2125 = vxpose.xlu0.b32.cont [14/16] 0.0, 128
        %2126 = vxpose.xlu0.b32.cont [15/16] 0.0, 128
        %2127 = vxpose.xlu0.b32.end [16/16] 0.0, 128
        %v2128 = vpop.trf.xlu0
        %v2129 = vpop.trf.xlu0
        %v2130 = vpop.trf.xlu0
        %v2131 = vpop.trf.xlu0
        %v2132 = vpop.trf.xlu0
        %v2133 = vpop.trf.xlu0
        %v2134 = vpop.trf.xlu0
        %v2135 = vpop.trf.xlu0
        %v2136 = vpop.trf.xlu0
        %v2137 = vpop.trf.xlu0
        %v2138 = vpop.trf.xlu0
        %v2139 = vpop.trf.xlu0
        %v2140 = vpop.trf.xlu0
        %v2141 = vpop.trf.xlu0
        %v2142 = vpop.trf.xlu0
        %v2143 = vpop.trf.xlu0
        %v2145 = vsel %vm652, %v2128, 0
        %2147 = vmatprep.subr.mxu0 0.0
        %2148 = vmatpush1.msra.mxu0 0.0
        %2149 = vmatprep.subr.mxu0 0.0
        %2150 = vmatpush1.msra.mxu0 0.0
        %2151 = vmatprep.subr.mxu0 0.0
        %2152 = vmatpush1.msra.mxu0 0.0
        %2153 = vmatprep.subr.mxu0 0.0
        %2154 = vmatpush1.msra.mxu0 0.0
        %2155 = vmatprep.subr.mxu0 0.0
        %2156 = vmatpush1.msra.mxu0 0.0
        %2157 = vmatprep.subr.mxu0 0.0
        %2158 = vmatpush1.msra.mxu0 0.0
        %2159 = vmatprep.subr.mxu0 0.0
        %2160 = vmatpush1.msra.mxu0 0.0
        %2161 = vmatprep.subr.mxu0 0.0
        %2162 = vmatpush1.msra.mxu0 0.0
        %2163 = vmatprep.subr.mxu0 0.0
        %2164 = vmatpush1.msra.mxu0 0.0
        %2165 = vmatprep.subr.mxu0 0.0
        %2166 = vmatpush1.msra.mxu0 0.0
        %2167 = vmatprep.subr.mxu0 0.0
        %2168 = vmatpush1.msra.mxu0 0.0
        %2169 = vmatprep.subr.mxu0 0.0
        %2170 = vmatpush1.msra.mxu0 0.0
        %2171 = vmatprep.subr.mxu0 0.0
        %2172 = vmatpush1.msra.mxu0 0.0
        %2173 = vmatprep.subr.mxu0 0.0
        %2174 = vmatpush1.msra.mxu0 0.0
        %2175 = vmatprep.subr.mxu0 0.0
        %2176 = vmatpush1.msra.mxu0 0.0
        %2177 = vmatprep.subr.mxu0 0.0
        %2178 = vmatpush1.msra.mxu0 %v229
        %2179 = vmatprep.subr.mxu0 0.0
        %2180 = vmatpush2.msra.mxu0 0.0
        %2181 = vmatprep.subr.mxu0 0.0
        %2182 = vmatpush2.msra.mxu0 0.0
        %2183 = vmatprep.subr.mxu0 0.0
        %2184 = vmatpush2.msra.mxu0 0.0
        %2185 = vmatprep.subr.mxu0 0.0
        %2186 = vmatpush2.msra.mxu0 0.0
        %2187 = vmatprep.subr.mxu0 0.0
        %2188 = vmatpush2.msra.mxu0 0.0
        %2189 = vmatprep.subr.mxu0 0.0
        %2190 = vmatpush2.msra.mxu0 0.0
        %2191 = vmatprep.subr.mxu0 0.0
        %2192 = vmatpush2.msra.mxu0 0.0
        %2193 = vmatprep.subr.mxu0 0.0
        %2194 = vmatpush2.msra.mxu0 0.0
        %2195 = vmatprep.subr.mxu0 0.0
        %2196 = vmatpush2.msra.mxu0 0.0
        %2197 = vmatprep.subr.mxu0 0.0
        %2198 = vmatpush2.msra.mxu0 0.0
        %2199 = vmatprep.subr.mxu0 0.0
        %2200 = vmatpush2.msra.mxu0 0.0
        %2201 = vmatprep.subr.mxu0 0.0
        %2202 = vmatpush2.msra.mxu0 0.0
        %2203 = vmatprep.subr.mxu0 0.0
        %2204 = vmatpush2.msra.mxu0 0.0
        %2205 = vmatprep.subr.mxu0 0.0
        %2206 = vmatpush2.msra.mxu0 0.0
        %2207 = vmatprep.subr.mxu0 0.0
        %2208 = vmatpush2.msra.mxu0 0.0
        %2209 = vmatprep.subr.mxu0 0.0
        %2210 = vmatpush2.msra.mxu0 0.0
        %2211 = vmatprep.mubr.f32.mxu0 0.0
        %2212 = vmatmul.mubr.f32.gmra.mxu0 %v2145
        %v2213 = vpop.f32.mrf.mxu0
        %v2214 = vadd.f32 0.0, %v2213
        %v2215 = vpop.f32.mrf.mxu0
        %2216 = vdwg.mxu0
        %2217 = vxpose.xlu0.b32.start [1/16] %v953, 128
        %2218 = vxpose.xlu0.b32.cont [2/16] 0.0, 128
        %2219 = vxpose.xlu0.b32.cont [3/16] 0.0, 128
        %2220 = vxpose.xlu0.b32.cont [4/16] 0.0, 128
        %2221 = vxpose.xlu0.b32.cont [5/16] 0.0, 128
        %2222 = vxpose.xlu0.b32.cont [6/16] 0.0, 128
        %2223 = vxpose.xlu0.b32.cont [7/16] 0.0, 128
        %2224 = vxpose.xlu0.b32.cont [8/16] 0.0, 128
        %2225 = vxpose.xlu0.b32.cont [9/16] 0.0, 128
        %2226 = vxpose.xlu0.b32.cont [10/16] 0.0, 128
        %2227 = vxpose.xlu0.b32.cont [11/16] 0.0, 128
        %2228 = vxpose.xlu0.b32.cont [12/16] 0.0, 128
        %2229 = vxpose.xlu0.b32.cont [13/16] 0.0, 128
        %2230 = vxpose.xlu0.b32.cont [14/16] 0.0, 128
        %2231 = vxpose.xlu0.b32.cont [15/16] 0.0, 128
        %2232 = vxpose.xlu0.b32.end [16/16] 0.0, 128
        %v2233 = vpop.trf.xlu0
        %v2234 = vpop.trf.xlu0
        %v2235 = vpop.trf.xlu0
        %v2236 = vpop.trf.xlu0
        %v2237 = vpop.trf.xlu0
        %v2238 = vpop.trf.xlu0
        %v2239 = vpop.trf.xlu0
        %v2240 = vpop.trf.xlu0
        %v2241 = vpop.trf.xlu0
        %v2242 = vpop.trf.xlu0
        %v2243 = vpop.trf.xlu0
        %v2244 = vpop.trf.xlu0
        %v2245 = vpop.trf.xlu0
        %v2246 = vpop.trf.xlu0
        %v2247 = vpop.trf.xlu0
        %v2248 = vpop.trf.xlu0
        %v2250 = vsel %vm652, %v2233, 0
        %2252 = vmatprep.subr.mxu0 0.0
        %2253 = vmatpush1.msra.mxu0 0.0
        %2254 = vmatprep.subr.mxu0 0.0
        %2255 = vmatpush1.msra.mxu0 0.0
        %2256 = vmatprep.subr.mxu0 0.0
        %2257 = vmatpush1.msra.mxu0 0.0
        %2258 = vmatprep.subr.mxu0 0.0
        %2259 = vmatpush1.msra.mxu0 0.0
        %2260 = vmatprep.subr.mxu0 0.0
        %2261 = vmatpush1.msra.mxu0 0.0
        %2262 = vmatprep.subr.mxu0 0.0
        %2263 = vmatpush1.msra.mxu0 0.0
        %2264 = vmatprep.subr.mxu0 0.0
        %2265 = vmatpush1.msra.mxu0 0.0
        %2266 = vmatprep.subr.mxu0 0.0
        %2267 = vmatpush1.msra.mxu0 0.0
        %2268 = vmatprep.subr.mxu0 0.0
        %2269 = vmatpush1.msra.mxu0 0.0
        %2270 = vmatprep.subr.mxu0 0.0
        %2271 = vmatpush1.msra.mxu0 0.0
        %2272 = vmatprep.subr.mxu0 0.0
        %2273 = vmatpush1.msra.mxu0 0.0
        %2274 = vmatprep.subr.mxu0 0.0
        %2275 = vmatpush1.msra.mxu0 0.0
        %2276 = vmatprep.subr.mxu0 0.0
        %2277 = vmatpush1.msra.mxu0 0.0
        %2278 = vmatprep.subr.mxu0 0.0
        %2279 = vmatpush1.msra.mxu0 0.0
        %2280 = vmatprep.subr.mxu0 0.0
        %2281 = vmatpush1.msra.mxu0 0.0
        %2282 = vmatprep.subr.mxu0 0.0
        %2283 = vmatpush1.msra.mxu0 %v230
        %2284 = vmatprep.subr.mxu0 0.0
        %2285 = vmatpush2.msra.mxu0 0.0
        %2286 = vmatprep.subr.mxu0 0.0
        %2287 = vmatpush2.msra.mxu0 0.0
        %2288 = vmatprep.subr.mxu0 0.0
        %2289 = vmatpush2.msra.mxu0 0.0
        %2290 = vmatprep.subr.mxu0 0.0
        %2291 = vmatpush2.msra.mxu0 0.0
        %2292 = vmatprep.subr.mxu0 0.0
        %2293 = vmatpush2.msra.mxu0 0.0
        %2294 = vmatprep.subr.mxu0 0.0
        %2295 = vmatpush2.msra.mxu0 0.0
        %2296 = vmatprep.subr.mxu0 0.0
        %2297 = vmatpush2.msra.mxu0 0.0
        %2298 = vmatprep.subr.mxu0 0.0
        %2299 = vmatpush2.msra.mxu0 0.0
        %2300 = vmatprep.subr.mxu0 0.0
        %2301 = vmatpush2.msra.mxu0 0.0
        %2302 = vmatprep.subr.mxu0 0.0
        %2303 = vmatpush2.msra.mxu0 0.0
        %2304 = vmatprep.subr.mxu0 0.0
        %2305 = vmatpush2.msra.mxu0 0.0
        %2306 = vmatprep.subr.mxu0 0.0
        %2307 = vmatpush2.msra.mxu0 0.0
        %2308 = vmatprep.subr.mxu0 0.0
        %2309 = vmatpush2.msra.mxu0 0.0
        %2310 = vmatprep.subr.mxu0 0.0
        %2311 = vmatpush2.msra.mxu0 0.0
        %2312 = vmatprep.subr.mxu0 0.0
        %2313 = vmatpush2.msra.mxu0 0.0
        %2314 = vmatprep.subr.mxu0 0.0
        %2315 = vmatpush2.msra.mxu0 0.0
        %2316 = vmatprep.mubr.f32.mxu0 0.0
        %2317 = vmatmul.mubr.f32.gmra.mxu0 %v2250
        %v2318 = vpop.f32.mrf.mxu0
        %v2319 = vadd.f32 0.0, %v2318
        %v2320 = vpop.f32.mrf.mxu0
        %2321 = vdwg.mxu0
        %2322 = vxpose.xlu0.b32.start [1/16] %v954, 128
        %2323 = vxpose.xlu0.b32.cont [2/16] 0.0, 128
        %2324 = vxpose.xlu0.b32.cont [3/16] 0.0, 128
        %2325 = vxpose.xlu0.b32.cont [4/16] 0.0, 128
        %2326 = vxpose.xlu0.b32.cont [5/16] 0.0, 128
        %2327 = vxpose.xlu0.b32.cont [6/16] 0.0, 128
        %2328 = vxpose.xlu0.b32.cont [7/16] 0.0, 128
        %2329 = vxpose.xlu0.b32.cont [8/16] 0.0, 128
        %2330 = vxpose.xlu0.b32.cont [9/16] 0.0, 128
        %2331 = vxpose.xlu0.b32.cont [10/16] 0.0, 128
        %2332 = vxpose.xlu0.b32.cont [11/16] 0.0, 128
        %2333 = vxpose.xlu0.b32.cont [12/16] 0.0, 128
        %2334 = vxpose.xlu0.b32.cont [13/16] 0.0, 128
        %2335 = vxpose.xlu0.b32.cont [14/16] 0.0, 128
        %2336 = vxpose.xlu0.b32.cont [15/16] 0.0, 128
        %2337 = vxpose.xlu0.b32.end [16/16] 0.0, 128
        %v2338 = vpop.trf.xlu0
        %v2339 = vpop.trf.xlu0
        %v2340 = vpop.trf.xlu0
        %v2341 = vpop.trf.xlu0
        %v2342 = vpop.trf.xlu0
        %v2343 = vpop.trf.xlu0
        %v2344 = vpop.trf.xlu0
        %v2345 = vpop.trf.xlu0
        %v2346 = vpop.trf.xlu0
        %v2347 = vpop.trf.xlu0
        %v2348 = vpop.trf.xlu0
        %v2349 = vpop.trf.xlu0
        %v2350 = vpop.trf.xlu0
        %v2351 = vpop.trf.xlu0
        %v2352 = vpop.trf.xlu0
        %v2353 = vpop.trf.xlu0
        %v2355 = vsel %vm652, %v2338, 0
        %2357 = vmatprep.subr.mxu0 0.0
        %2358 = vmatpush1.msra.mxu0 0.0
        %2359 = vmatprep.subr.mxu0 0.0
        %2360 = vmatpush1.msra.mxu0 0.0
        %2361 = vmatprep.subr.mxu0 0.0
        %2362 = vmatpush1.msra.mxu0 0.0
        %2363 = vmatprep.subr.mxu0 0.0
        %2364 = vmatpush1.msra.mxu0 0.0
        %2365 = vmatprep.subr.mxu0 0.0
        %2366 = vmatpush1.msra.mxu0 0.0
        %2367 = vmatprep.subr.mxu0 0.0
        %2368 = vmatpush1.msra.mxu0 0.0
        %2369 = vmatprep.subr.mxu0 0.0
        %2370 = vmatpush1.msra.mxu0 0.0
        %2371 = vmatprep.subr.mxu0 0.0
        %2372 = vmatpush1.msra.mxu0 0.0
        %2373 = vmatprep.subr.mxu0 0.0
        %2374 = vmatpush1.msra.mxu0 0.0
        %2375 = vmatprep.subr.mxu0 0.0
        %2376 = vmatpush1.msra.mxu0 0.0
        %2377 = vmatprep.subr.mxu0 0.0
        %2378 = vmatpush1.msra.mxu0 0.0
        %2379 = vmatprep.subr.mxu0 0.0
        %2380 = vmatpush1.msra.mxu0 0.0
        %2381 = vmatprep.subr.mxu0 0.0
        %2382 = vmatpush1.msra.mxu0 0.0
        %2383 = vmatprep.subr.mxu0 0.0
        %2384 = vmatpush1.msra.mxu0 0.0
        %2385 = vmatprep.subr.mxu0 0.0
        %2386 = vmatpush1.msra.mxu0 0.0
        %2387 = vmatprep.subr.mxu0 0.0
        %2388 = vmatpush1.msra.mxu0 %v231
        %2389 = vmatprep.subr.mxu0 0.0
        %2390 = vmatpush2.msra.mxu0 0.0
        %2391 = vmatprep.subr.mxu0 0.0
        %2392 = vmatpush2.msra.mxu0 0.0
        %2393 = vmatprep.subr.mxu0 0.0
        %2394 = vmatpush2.msra.mxu0 0.0
        %2395 = vmatprep.subr.mxu0 0.0
        %2396 = vmatpush2.msra.mxu0 0.0
        %2397 = vmatprep.subr.mxu0 0.0
        %2398 = vmatpush2.msra.mxu0 0.0
        %2399 = vmatprep.subr.mxu0 0.0
        %2400 = vmatpush2.msra.mxu0 0.0
        %2401 = vmatprep.subr.mxu0 0.0
        %2402 = vmatpush2.msra.mxu0 0.0
        %2403 = vmatprep.subr.mxu0 0.0
        %2404 = vmatpush2.msra.mxu0 0.0
        %2405 = vmatprep.subr.mxu0 0.0
        %2406 = vmatpush2.msra.mxu0 0.0
        %2407 = vmatprep.subr.mxu0 0.0
        %2408 = vmatpush2.msra.mxu0 0.0
        %2409 = vmatprep.subr.mxu0 0.0
        %2410 = vmatpush2.msra.mxu0 0.0
        %2411 = vmatprep.subr.mxu0 0.0
        %2412 = vmatpush2.msra.mxu0 0.0
        %2413 = vmatprep.subr.mxu0 0.0
        %2414 = vmatpush2.msra.mxu0 0.0
        %2415 = vmatprep.subr.mxu0 0.0
        %2416 = vmatpush2.msra.mxu0 0.0
        %2417 = vmatprep.subr.mxu0 0.0
        %2418 = vmatpush2.msra.mxu0 0.0
        %2419 = vmatprep.subr.mxu0 0.0
        %2420 = vmatpush2.msra.mxu0 0.0
        %2421 = vmatprep.mubr.f32.mxu0 0.0
        %2422 = vmatmul.mubr.f32.gmra.mxu0 %v2355
        %v2423 = vpop.f32.mrf.mxu0
        %v2424 = vadd.f32 0.0, %v2423
        %v2425 = vpop.f32.mrf.mxu0
        %2426 = vdwg.mxu0
        %2427 = vxpose.xlu0.b32.start [1/16] %v955, 128
        %2428 = vxpose.xlu0.b32.cont [2/16] 0.0, 128
        %2429 = vxpose.xlu0.b32.cont [3/16] 0.0, 128
        %2430 = vxpose.xlu0.b32.cont [4/16] 0.0, 128
        %2431 = vxpose.xlu0.b32.cont [5/16] 0.0, 128
        %2432 = vxpose.xlu0.b32.cont [6/16] 0.0, 128
        %2433 = vxpose.xlu0.b32.cont [7/16] 0.0, 128
        %2434 = vxpose.xlu0.b32.cont [8/16] 0.0, 128
        %2435 = vxpose.xlu0.b32.cont [9/16] 0.0, 128
        %2436 = vxpose.xlu0.b32.cont [10/16] 0.0, 128
        %2437 = vxpose.xlu0.b32.cont [11/16] 0.0, 128
        %2438 = vxpose.xlu0.b32.cont [12/16] 0.0, 128
        %2439 = vxpose.xlu0.b32.cont [13/16] 0.0, 128
        %2440 = vxpose.xlu0.b32.cont [14/16] 0.0, 128
        %2441 = vxpose.xlu0.b32.cont [15/16] 0.0, 128
        %2442 = vxpose.xlu0.b32.end [16/16] 0.0, 128
        %v2443 = vpop.trf.xlu0
        %v2444 = vpop.trf.xlu0
        %v2445 = vpop.trf.xlu0
        %v2446 = vpop.trf.xlu0
        %v2447 = vpop.trf.xlu0
        %v2448 = vpop.trf.xlu0
        %v2449 = vpop.trf.xlu0
        %v2450 = vpop.trf.xlu0
        %v2451 = vpop.trf.xlu0
        %v2452 = vpop.trf.xlu0
        %v2453 = vpop.trf.xlu0
        %v2454 = vpop.trf.xlu0
        %v2455 = vpop.trf.xlu0
        %v2456 = vpop.trf.xlu0
        %v2457 = vpop.trf.xlu0
        %v2458 = vpop.trf.xlu0
        %v2460 = vsel %vm652, %v2443, 0
        %2462 = vmatprep.subr.mxu0 0.0
        %2463 = vmatpush1.msra.mxu0 0.0
        %2464 = vmatprep.subr.mxu0 0.0
        %2465 = vmatpush1.msra.mxu0 0.0
        %2466 = vmatprep.subr.mxu0 0.0
        %2467 = vmatpush1.msra.mxu0 0.0
        %2468 = vmatprep.subr.mxu0 0.0
        %2469 = vmatpush1.msra.mxu0 0.0
        %2470 = vmatprep.subr.mxu0 0.0
        %2471 = vmatpush1.msra.mxu0 0.0
        %2472 = vmatprep.subr.mxu0 0.0
        %2473 = vmatpush1.msra.mxu0 0.0
        %2474 = vmatprep.subr.mxu0 0.0
        %2475 = vmatpush1.msra.mxu0 0.0
        %2476 = vmatprep.subr.mxu0 0.0
        %2477 = vmatpush1.msra.mxu0 0.0
        %2478 = vmatprep.subr.mxu0 0.0
        %2479 = vmatpush1.msra.mxu0 0.0
        %2480 = vmatprep.subr.mxu0 0.0
        %2481 = vmatpush1.msra.mxu0 0.0
        %2482 = vmatprep.subr.mxu0 0.0
        %2483 = vmatpush1.msra.mxu0 0.0
        %2484 = vmatprep.subr.mxu0 0.0
        %2485 = vmatpush1.msra.mxu0 0.0
        %2486 = vmatprep.subr.mxu0 0.0
        %2487 = vmatpush1.msra.mxu0 0.0
        %2488 = vmatprep.subr.mxu0 0.0
        %2489 = vmatpush1.msra.mxu0 0.0
        %2490 = vmatprep.subr.mxu0 0.0
        %2491 = vmatpush1.msra.mxu0 0.0
        %2492 = vmatprep.subr.mxu0 0.0
        %2493 = vmatpush1.msra.mxu0 %v232
        %2494 = vmatprep.subr.mxu0 0.0
        %2495 = vmatpush2.msra.mxu0 0.0
        %2496 = vmatprep.subr.mxu0 0.0
        %2497 = vmatpush2.msra.mxu0 0.0
        %2498 = vmatprep.subr.mxu0 0.0
        %2499 = vmatpush2.msra.mxu0 0.0
        %2500 = vmatprep.subr.mxu0 0.0
        %2501 = vmatpush2.msra.mxu0 0.0
        %2502 = vmatprep.subr.mxu0 0.0
        %2503 = vmatpush2.msra.mxu0 0.0
        %2504 = vmatprep.subr.mxu0 0.0
        %2505 = vmatpush2.msra.mxu0 0.0
        %2506 = vmatprep.subr.mxu0 0.0
        %2507 = vmatpush2.msra.mxu0 0.0
        %2508 = vmatprep.subr.mxu0 0.0
        %2509 = vmatpush2.msra.mxu0 0.0
        %2510 = vmatprep.subr.mxu0 0.0
        %2511 = vmatpush2.msra.mxu0 0.0
        %2512 = vmatprep.subr.mxu0 0.0
        %2513 = vmatpush2.msra.mxu0 0.0
        %2514 = vmatprep.subr.mxu0 0.0
        %2515 = vmatpush2.msra.mxu0 0.0
        %2516 = vmatprep.subr.mxu0 0.0
        %2517 = vmatpush2.msra.mxu0 0.0
        %2518 = vmatprep.subr.mxu0 0.0
        %2519 = vmatpush2.msra.mxu0 0.0
        %2520 = vmatprep.subr.mxu0 0.0
        %2521 = vmatpush2.msra.mxu0 0.0
        %2522 = vmatprep.subr.mxu0 0.0
        %2523 = vmatpush2.msra.mxu0 0.0
        %2524 = vmatprep.subr.mxu0 0.0
        %2525 = vmatpush2.msra.mxu0 0.0
        %2526 = vmatprep.mubr.f32.mxu0 0.0
        %2527 = vmatmul.mubr.f32.gmra.mxu0 %v2460
        %v2528 = vpop.f32.mrf.mxu0
        %v2529 = vadd.f32 0.0, %v2528
        %v2530 = vpop.f32.mrf.mxu0
        %2531 = vdwg.mxu0
        %2532 = vxpose.xlu0.b32.start [1/16] %v956, 128
        %2533 = vxpose.xlu0.b32.cont [2/16] 0.0, 128
        %2534 = vxpose.xlu0.b32.cont [3/16] 0.0, 128
        %2535 = vxpose.xlu0.b32.cont [4/16] 0.0, 128
        %2536 = vxpose.xlu0.b32.cont [5/16] 0.0, 128
        %2537 = vxpose.xlu0.b32.cont [6/16] 0.0, 128
        %2538 = vxpose.xlu0.b32.cont [7/16] 0.0, 128
        %2539 = vxpose.xlu0.b32.cont [8/16] 0.0, 128
        %2540 = vxpose.xlu0.b32.cont [9/16] 0.0, 128
        %2541 = vxpose.xlu0.b32.cont [10/16] 0.0, 128
        %2542 = vxpose.xlu0.b32.cont [11/16] 0.0, 128
        %2543 = vxpose.xlu0.b32.cont [12/16] 0.0, 128
        %2544 = vxpose.xlu0.b32.cont [13/16] 0.0, 128
        %2545 = vxpose.xlu0.b32.cont [14/16] 0.0, 128
        %2546 = vxpose.xlu0.b32.cont [15/16] 0.0, 128
        %2547 = vxpose.xlu0.b32.end [16/16] 0.0, 128
        %v2548 = vpop.trf.xlu0
        %v2549 = vpop.trf.xlu0
        %v2550 = vpop.trf.xlu0
        %v2551 = vpop.trf.xlu0
        %v2552 = vpop.trf.xlu0
        %v2553 = vpop.trf.xlu0
        %v2554 = vpop.trf.xlu0
        %v2555 = vpop.trf.xlu0
        %v2556 = vpop.trf.xlu0
        %v2557 = vpop.trf.xlu0
        %v2558 = vpop.trf.xlu0
        %v2559 = vpop.trf.xlu0
        %v2560 = vpop.trf.xlu0
        %v2561 = vpop.trf.xlu0
        %v2562 = vpop.trf.xlu0
        %v2563 = vpop.trf.xlu0
        %v2565 = vsel %vm652, %v2548, 0
        %2567 = vmatprep.subr.mxu0 0.0
        %2568 = vmatpush1.msra.mxu0 0.0
        %2569 = vmatprep.subr.mxu0 0.0
        %2570 = vmatpush1.msra.mxu0 0.0
        %2571 = vmatprep.subr.mxu0 0.0
        %2572 = vmatpush1.msra.mxu0 0.0
        %2573 = vmatprep.subr.mxu0 0.0
        %2574 = vmatpush1.msra.mxu0 0.0
        %2575 = vmatprep.subr.mxu0 0.0
        %2576 = vmatpush1.msra.mxu0 0.0
        %2577 = vmatprep.subr.mxu0 0.0
        %2578 = vmatpush1.msra.mxu0 0.0
        %2579 = vmatprep.subr.mxu0 0.0
        %2580 = vmatpush1.msra.mxu0 0.0
        %2581 = vmatprep.subr.mxu0 0.0
        %2582 = vmatpush1.msra.mxu0 0.0
        %2583 = vmatprep.subr.mxu0 0.0
        %2584 = vmatpush1.msra.mxu0 0.0
        %2585 = vmatprep.subr.mxu0 0.0
        %2586 = vmatpush1.msra.mxu0 0.0
        %2587 = vmatprep.subr.mxu0 0.0
        %2588 = vmatpush1.msra.mxu0 0.0
        %2589 = vmatprep.subr.mxu0 0.0
        %2590 = vmatpush1.msra.mxu0 0.0
        %2591 = vmatprep.subr.mxu0 0.0
        %2592 = vmatpush1.msra.mxu0 0.0
        %2593 = vmatprep.subr.mxu0 0.0
        %2594 = vmatpush1.msra.mxu0 0.0
        %2595 = vmatprep.subr.mxu0 0.0
        %2596 = vmatpush1.msra.mxu0 0.0
        %2597 = vmatprep.subr.mxu0 0.0
        %2598 = vmatpush1.msra.mxu0 %v233
        %2599 = vmatprep.subr.mxu0 0.0
        %2600 = vmatpush2.msra.mxu0 0.0
        %2601 = vmatprep.subr.mxu0 0.0
        %2602 = vmatpush2.msra.mxu0 0.0
        %2603 = vmatprep.subr.mxu0 0.0
        %2604 = vmatpush2.msra.mxu0 0.0
        %2605 = vmatprep.subr.mxu0 0.0
        %2606 = vmatpush2.msra.mxu0 0.0
        %2607 = vmatprep.subr.mxu0 0.0
        %2608 = vmatpush2.msra.mxu0 0.0
        %2609 = vmatprep.subr.mxu0 0.0
        %2610 = vmatpush2.msra.mxu0 0.0
        %2611 = vmatprep.subr.mxu0 0.0
        %2612 = vmatpush2.msra.mxu0 0.0
        %2613 = vmatprep.subr.mxu0 0.0
        %2614 = vmatpush2.msra.mxu0 0.0
        %2615 = vmatprep.subr.mxu0 0.0
        %2616 = vmatpush2.msra.mxu0 0.0
        %2617 = vmatprep.subr.mxu0 0.0
        %2618 = vmatpush2.msra.mxu0 0.0
        %2619 = vmatprep.subr.mxu0 0.0
        %2620 = vmatpush2.msra.mxu0 0.0
        %2621 = vmatprep.subr.mxu0 0.0
        %2622 = vmatpush2.msra.mxu0 0.0
        %2623 = vmatprep.subr.mxu0 0.0
        %2624 = vmatpush2.msra.mxu0 0.0
        %2625 = vmatprep.subr.mxu0 0.0
        %2626 = vmatpush2.msra.mxu0 0.0
        %2627 = vmatprep.subr.mxu0 0.0
        %2628 = vmatpush2.msra.mxu0 0.0
        %2629 = vmatprep.subr.mxu0 0.0
        %2630 = vmatpush2.msra.mxu0 0.0
        %2631 = vmatprep.mubr.f32.mxu0 0.0
        %2632 = vmatmul.mubr.f32.gmra.mxu0 %v2565
        %v2633 = vpop.f32.mrf.mxu0
        %v2634 = vadd.f32 0.0, %v2633
        %v2635 = vpop.f32.mrf.mxu0
        %2636 = vdwg.mxu0
        %2637 = vst.msk [vmem:[%s215] sm:$0xff] %vm245, %v1059
        %2638 = vst.msk [vmem:[%s215 + $0x8] sm:$0xff] %vm245, %v1164
        %2639 = vst.msk [vmem:[%s215 + $0x10] sm:$0xff] %vm245, %v1269
        %2640 = vst.msk [vmem:[%s215 + $0x18] sm:$0xff] %vm245, %v1374
        %2641 = vst.msk [vmem:[%s215 + $0x20] sm:$0xff] %vm245, %v1479
        %2642 = vst.msk [vmem:[%s215 + $0x28] sm:$0xff] %vm245, %v1584
        %2643 = vst.msk [vmem:[%s215 + $0x30] sm:$0xff] %vm245, %v1689
        %2644 = vst.msk [vmem:[%s215 + $0x38] sm:$0xff] %vm245, %v1794
        %2645 = vst.msk [vmem:[%s215 + $0x40] sm:$0xff] %vm245, %v1899
        %2646 = vst.msk [vmem:[%s215 + $0x48] sm:$0xff] %vm245, %v2004
        %2647 = vst.msk [vmem:[%s215 + $0x50] sm:$0xff] %vm245, %v2109
        %2648 = vst.msk [vmem:[%s215 + $0x58] sm:$0xff] %vm245, %v2214
        %2649 = vst.msk [vmem:[%s215 + $0x60] sm:$0xff] %vm245, %v2319
        %2650 = vst.msk [vmem:[%s215 + $0x68] sm:$0xff] %vm245, %v2424
        %2651 = vst.msk [vmem:[%s215 + $0x70] sm:$0xff] %vm245, %v2529
        %2652 = vst.msk [vmem:[%s215 + $0x78] sm:$0xff] %vm245, %v2634
        %s2653 = sand.u32 %s118, 1
        %s2654 = scalar_lea.sflag [#allocation4], %s2653
        %s2655 = sand.u32 %s118, 1
        %s2656 = smul.addr %s2655, 128
        %s2657 = scalar_lea.vmem [#allocation5], %s2656
        // Predicated region
        $region41: #{nc_label_specific_self_attention.1} parent=35 // pred_check
          %p2658 = pneg %p128
        $region42: #{nc_label_specific_self_attention.1} parent=35 // pred_check_branch
          %2660 = sbr.rel (%p2658) target = $region44
        $region43: #{nc_label_specific_self_attention.1} parent=35 // pred_region
          %s2661 = smul.u32 16, %s21
          %s2663 = ssub.s32 2048, 2048
          %2664 = vsyncadd %s2654, %s2663
          %s2665 = smul.addr %s2661, 128
          %s2666 = scalar_lea.hbm %s4, %s2665
          %s2667 = sshll.u32 %s2657, 4
          %s2668 = int_to_ptr.vmem [resolvable:$true] %s2667
          %2673 = dma.vmem_to_hbm [thread:$0]  %s2668, 2048, %s2666, %s2654, 128, 128, 8
        $region44: #{nc_label_specific_self_attention.1} parent=35 // pred_fallthru
          _
      $region36: #{nc_label_specific_self_attention.1} parent=5 // pred_fallthru
        _
      %p2674 = scmp.le.s32.totalorder 2, %s16
      // Predicated region
      $region45: #{nc_label_specific_self_attention.1} parent=5 // pred_check
        %p2675 = pneg %p2674
      $region46: #{nc_label_specific_self_attention.1} parent=5 // pred_check_branch
        %2677 = sbr.rel (%p2675) target = $region48
      $region47: #{nc_label_specific_self_attention.1} parent=5 // pred_region
        %s2678 = ssub.s32 %s16, 2
        // Predicated region
        $region49: #{nc_label_specific_self_attention.1} parent=47 // pred_check
          %p2679 = pneg %p134
        $region50: #{nc_label_specific_self_attention.1} parent=47 // pred_check_branch
          %2681 = sbr.rel (%p2679) target = $region52
        $region51: #{nc_label_specific_self_attention.1} parent=47 // pred_region
          %s2682 = sand.u32 %s119, 1
          %s2683 = scalar_lea.sflag [#allocation4], %s2682
          %s2684 = sand.u32 %s119, 1
          %s2685 = smul.addr %s2684, 128
          %s2686 = scalar_lea.vmem [#allocation5], %s2685
          %2687 = dma.done %s2683, 2048
        $region52: #{nc_label_specific_self_attention.1} parent=47 // pred_fallthru
          _
      $region48: #{nc_label_specific_self_attention.1} parent=5 // pred_fallthru
        _
    $region6: #{nc_label_specific_self_attention.1} parent=1 // loop_footer
      %s20 = sadd.s32 1, %s16
    $region7: #{nc_label_specific_self_attention.1} parent=1 // loop_footer_branch
      %15 = sbr.rel target = $region3
    $region8: #{nc_label_specific_self_attention.1} parent=1 // loop_exit
      _
    %2688 = vsyncpa [#allocation3], 1
    %s2689 = scalar_lea.sflag [#allocation3], 1
    %2690 = vsyncpa %s2689, 1
    %2691 = vsyncpa [#allocation4], 1
    %s2692 = scalar_lea.sflag [#allocation4], 1
    %2693 = vsyncpa %s2692, 1

</llo_original>
